<compile_context>
chip_gen: v6e
topology: v6e:2x2x1
jax: 0.10.0
libtpu: 0.0.40
codegen_flags: <defaults>
</compile_context>

<pallas_src>
import jax
import jax.numpy as jnp
import numpy as np
from jax.experimental import pallas as pl
from jax.experimental.pallas import tpu as pltpu

# ---------------------------------------------------------------------------
# Small synthetic config (shapes consistent with the module's __init__)
# ---------------------------------------------------------------------------
HIDDEN_DIM = 32            # CONTEXT_HIDDEN_DIM
POOLING_DIM = 64           # CONTEXT_POOLING_DIM
MLP_HEAD_DIM = 48          # ROI_BOX_HEAD.MLP_HEAD_DIM != POOLING_DIM -> up_dim used
NUM_OBJ_CLS = 11           # ROI_BOX_HEAD.NUM_CLASSES
NUM_REL_CLS = 16           # ROI_RELATION_HEAD.NUM_CLASSES
IN_CHANNELS = 40           # roi_feature dim fed to the context layer
USE_VISION = True
USE_BIAS = True


# ---------------------------------------------------------------------------
# Fused Pallas kernel: whole eval-mode predictor in one launch, one block.
# ---------------------------------------------------------------------------
def _fused_predictor_kernel(
    roi_ref,        # (N, IN_CHANNELS)           f32
    union_ref,      # (R, MLP_HEAD_DIM)          f32
    hidx_ref,       # (R, 1)                     i32  global subject index
    tidx_ref,       # (R, 1)                     i32  global object index
    w_oe_ref,       # (IN, NUM_OBJ + HIDDEN)     fused [w_obj | w_edge]
    b_oe_ref,       # (1,  NUM_OBJ + HIDDEN)
    w_pe_ref,       # (HIDDEN, 2*HIDDEN)         post_emb
    b_pe_ref,       # (1, 2*HIDDEN)
    w_head_ref,     # (HIDDEN, POOL + REL)       fused [post_cat[:H] | ctx_compress[:H]]
    w_tail_ref,     # (HIDDEN, POOL + REL)       fused [post_cat[H:] | ctx_compress[H:]]
    b_cat_ref,      # (1, POOL)
    b_ctx_ref,      # (1, REL)
    w_up_ref,       # (MLP_HEAD_DIM, POOL)
    b_up_ref,       # (1, POOL)
    w_rel_ref,      # (POOL, REL)
    b_rel_ref,      # (1, REL)
    freq_ref,       # (NUM_OBJ^2, REL)
    obj_out_ref,    # (N, NUM_OBJ)               output
    rel_out_ref,    # (R, REL)                   output
):
    f32 = jnp.float32
    n_obj = roi_ref.shape[0]
    n_rel = hidx_ref.shape[0]

    # --- context-layer stand-in: obj_dists & edge_ctx from one merged matmul --
    roi = roi_ref[...]
    oe = jnp.dot(roi, w_oe_ref[...], preferred_element_type=f32) + b_oe_ref[...]
    obj_dists = oe[:, :NUM_OBJ_CLS]                 # (N, NUM_OBJ)
    edge_ctx = oe[:, NUM_OBJ_CLS:]                  # (N, HIDDEN)
    obj_out_ref[...] = obj_dists.astype(obj_out_ref.dtype)

    # --- obj_preds = argmax(obj_dists) (first-occurrence semantics) -----------
    max_v = jnp.max(obj_dists, axis=-1, keepdims=True)
    col = jax.lax.broadcasted_iota(jnp.int32, (n_obj, NUM_OBJ_CLS), 1)
    pred = jnp.min(jnp.where(obj_dists == max_v, col, NUM_OBJ_CLS),
                   axis=-1, keepdims=True)          # (N, 1) int32
    pred_f = pred.astype(f32)

    # --- post_emb: edge_rep -> head_rep / tail_rep (view(N,2,H) split) --------
    edge_rep = (jnp.dot(edge_ctx, w_pe_ref[...], preferred_element_type=f32)
                + b_pe_ref[...])                    # (N, 2H)
    head_rep = edge_rep[:, :HIDDEN_DIM]
    tail_rep = edge_rep[:, HIDDEN_DIM:]

    # --- per-pair gathers via exact one-hot MXU matmuls ------------------------
    row_ids = jax.lax.broadcasted_iota(jnp.int32, (n_rel, n_obj), 1)
    oh_h = (hidx_ref[...] == row_ids).astype(f32)   # (R, N)
    oh_t = (tidx_ref[...] == row_ids).astype(f32)   # (R, N)
    head_g = jnp.dot(oh_h, head_rep, preferred_element_type=f32)   # (R, H)
    tail_g = jnp.dot(oh_t, tail_rep, preferred_element_type=f32)   # (R, H)

    # --- FrequencyBias.index_with_labels(pair_pred) ----------------------------
    # pair_pred gather done on the VPU (sum-reduce of one-hot * pred) — exact.
    p0 = jnp.sum(oh_h * pred_f.reshape(1, n_obj), axis=-1, keepdims=True)  # (R, 1)
    p1 = jnp.sum(oh_t * pred_f.reshape(1, n_obj), axis=-1, keepdims=True)  # (R, 1)
    fb_idx = (p0 * NUM_OBJ_CLS + p1).astype(jnp.int32)                     # exact ints
    fb_cols = jax.lax.broadcasted_iota(
        jnp.int32, (n_rel, NUM_OBJ_CLS * NUM_OBJ_CLS), 1)
    fb_oh = (fb_idx == fb_cols).astype(f32)                                # (R, 121)
    freq_bias = jnp.dot(fb_oh, freq_ref[...], preferred_element_type=f32)

    # --- post_cat + ctx_compress (merged weights, prod_rep kept implicit) ------
    pre = (jnp.dot(head_g, w_head_ref[...], preferred_element_type=f32)
           + jnp.dot(tail_g, w_tail_ref[...], preferred_element_type=f32))
    ctx_gate = pre[:, :POOLING_DIM] + b_cat_ref[...]                # post_cat(prod_rep)
    ctx_comp = pre[:, POOLING_DIM:] + b_ctx_ref[...]                # ctx_compress(prod_rep)

    # --- visual branch: visual_rep = ctx_gate * up_dim(union_features) ---------
    if USE_VISION:
        up = (jnp.dot(union_ref[...], w_up_ref[...], preferred_element_type=f32)
              + b_up_ref[...])
        visual_rep = ctx_gate * up
    else:
        visual_rep = ctx_gate

    # --- rel_dists --------------------------------------------------------------
    rel = (jnp.dot(visual_rep, w_rel_ref[...], preferred_element_type=f32)
           + b_rel_ref[...] + ctx_comp)
    if USE_BIAS:
        rel = rel + freq_bias
    rel_out_ref[...] = rel.astype(rel_out_ref.dtype)


# ---------------------------------------------------------------------------
# Parameters (deterministic synthetic init; weights stored as (in, out))
# ---------------------------------------------------------------------------
def init_params(key):
    ks = jax.random.split(key, 10)
    h2 = 2 * HIDDEN_DIM

    def normal(k, shape, scale):
        return scale * jax.random.normal(k, shape, dtype=jnp.float32)

    def xavier(k, shape):
        return normal(k, shape, (2.0 / (shape[0] + shape[1])) ** 0.5)

    return {
        # stand-in context layer (see TODO(synk) above)
        'w_obj': normal(ks[0], (IN_CHANNELS, NUM_OBJ_CLS), 0.1),
        'b_obj': jnp.zeros((NUM_OBJ_CLS,), jnp.float32),
        'w_edge': normal(ks[1], (IN_CHANNELS, HIDDEN_DIM), 0.1),
        'b_edge': jnp.zeros((HIDDEN_DIM,), jnp.float32),
        # post_emb: normal init with std 10*sqrt(1/hidden_dim), as in layer_init
        'w_post_emb': normal(ks[2], (HIDDEN_DIM, h2), 10.0 * (1.0 / HIDDEN_DIM) ** 0.5),
        'b_post_emb': jnp.zeros((h2,), jnp.float32),
        'w_post_cat': xavier(ks[3], (h2, POOLING_DIM)),
        'b_post_cat': jnp.zeros((POOLING_DIM,), jnp.float32),
        'w_up_dim': xavier(ks[4], (MLP_HEAD_DIM, POOLING_DIM)),
        'b_up_dim': jnp.zeros((POOLING_DIM,), jnp.float32),
        'w_rel_compress': xavier(ks[5], (POOLING_DIM, NUM_REL_CLS)),
        'b_rel_compress': jnp.zeros((NUM_REL_CLS,), jnp.float32),
        'w_ctx_compress': xavier(ks[6], (h2, NUM_REL_CLS)),
        'b_ctx_compress': jnp.zeros((NUM_REL_CLS,), jnp.float32),
        # FrequencyBias embedding table: (num_obj_cls^2, num_rel_cls)
        'freq_table': normal(ks[7], (NUM_OBJ_CLS * NUM_OBJ_CLS, NUM_REL_CLS), 0.1),
    }


def fuse_params(p):
    """One-time weight fusion so the kernel sees merged / lane-friendly operands."""
    h = HIDDEN_DIM
    return {
        'w_oe': jnp.concatenate([p['w_obj'], p['w_edge']], axis=1),
        'b_oe': jnp.concatenate([p['b_obj'], p['b_edge']]).reshape(1, -1),
        'w_post_emb': p['w_post_emb'],
        'b_post_emb': p['b_post_emb'].reshape(1, -1),
        # [post_cat | ctx_compress] split into head-half / tail-half of prod_rep
        'w_head': jnp.concatenate([p['w_post_cat'][:h], p['w_ctx_compress'][:h]], axis=1),
        'w_tail': jnp.concatenate([p['w_post_cat'][h:], p['w_ctx_compress'][h:]], axis=1),
        'b_post_cat': p['b_post_cat'].reshape(1, -1),
        'b_ctx_compress': p['b_ctx_compress'].reshape(1, -1),
        'w_up_dim': p['w_up_dim'],
        'b_up_dim': p['b_up_dim'].reshape(1, -1),
        'w_rel_compress': p['w_rel_compress'],
        'b_rel_compress': p['b_rel_compress'].reshape(1, -1),
        'freq_table': p['freq_table'],
    }


# ---------------------------------------------------------------------------
# Forward (eval mode) — one pallas_call
# ---------------------------------------------------------------------------
def _global_pair_indices(rel_pair_idxs, num_objs):
    hidx_list, tidx_list = [], []
    off = 0
    for n_obj, pair_idx in zip(num_objs, rel_pair_idxs):
        hidx_list.append(pair_idx[:, 0].astype(jnp.int32) + off)
        tidx_list.append(pair_idx[:, 1].astype(jnp.int32) + off)
        off += n_obj
    hidx = jnp.concatenate(hidx_list).reshape(-1, 1)
    tidx = jnp.concatenate(tidx_list).reshape(-1, 1)
    return hidx, tidx


def transformer_predictor_im_forward(fparams, roi_features, union_features,
                                     rel_pair_idxs, num_objs):
    n_obj_total = roi_features.shape[0]
    r_total = union_features.shape[0]

    # Per-image pair indices -> global indices (tiny integer glue, traced once).
    hidx, tidx = _global_pair_indices(rel_pair_idxs, num_objs)

    in_arrays = [
        roi_features, union_features, hidx, tidx,
        fparams['w_oe'], fparams['b_oe'],
        fparams['w_post_emb'], fparams['b_post_emb'],
        fparams['w_head'], fparams['w_tail'],
        fparams['b_post_cat'], fparams['b_ctx_compress'],
        fparams['w_up_dim'], fparams['b_up_dim'],
        fparams['w_rel_compress'], fparams['b_rel_compress'],
        fparams['freq_table'],
    ]

    def full_block(shape):
        # block == full array -> single VMEM tile, no (8,128) divisibility needed
        return pl.BlockSpec(shape, lambda i: (0, 0))

    obj_dists_all, rel_dists_all = pl.pallas_call(
        _fused_predictor_kernel,
        out_shape=(
            jax.ShapeDtypeStruct((n_obj_total, NUM_OBJ_CLS), jnp.float32),
            jax.ShapeDtypeStruct((r_total, NUM_REL_CLS), jnp.float32),
        ),
        grid=(1,),
        in_specs=[full_block(a.shape) for a in in_arrays],
        out_specs=(
            full_block((n_obj_total, NUM_OBJ_CLS)),
            full_block((r_total, NUM_REL_CLS)),
        ),
        compiler_params=pltpu.CompilerParams(
            dimension_semantics=("arbitrary",)),
    )(*in_arrays)

    # --- split per image (matches .split(num_objs/num_rels)) ------------------
    num_rels = [int(p.shape[0]) for p in rel_pair_idxs]
    obj_splits, rel_splits = [], []
    o = 0
    for n in num_objs:
        obj_splits.append(obj_dists_all[o:o + n]); o += n
    r = 0
    for n in num_rels:
        rel_splits.append(rel_dists_all[r:r + n]); r += n

    add_losses = {}   # eval mode: training-only rel_im_loss2 branch not taken
    add_data = {}
    return obj_splits, rel_splits, add_losses, add_data


# ---------------------------------------------------------------------------
# Pure-JAX reference (HIGHEST-precision dots) for correctness check
# ---------------------------------------------------------------------------
def reference_forward(p, roi_features, union_features, rel_pair_idxs, num_objs):
    hp = jax.lax.Precision.HIGHEST
    hidx, tidx = _global_pair_indices(rel_pair_idxs, num_objs)
    hidx = hidx[:, 0]
    tidx = tidx[:, 0]

    obj_dists = jnp.dot(roi_features, p['w_obj'], precision=hp) + p['b_obj']
    edge_ctx = jnp.dot(roi_features, p['w_edge'], precision=hp) + p['b_edge']
    obj_preds = jnp.argmax(obj_dists, axis=-1)

    edge_rep = jnp.dot(edge_ctx, p['w_post_emb'], precision=hp) + p['b_post_emb']
    head_rep = edge_rep[:, :HIDDEN_DIM]
    tail_rep = edge_rep[:, HIDDEN_DIM:]

    prod_rep = jnp.concatenate([head_rep[hidx], tail_rep[tidx]], axis=-1)
    ctx_gate = jnp.dot(prod_rep, p['w_post_cat'], precision=hp) + p['b_post_cat']
    up = jnp.dot(union_features, p['w_up_dim'], precision=hp) + p['b_up_dim']
    visual_rep = ctx_gate * up if USE_VISION else ctx_gate

    rel_dists = (jnp.dot(visual_rep, p['w_rel_compress'], precision=hp)
                 + p['b_rel_compress']
                 + jnp.dot(prod_rep, p['w_ctx_compress'], precision=hp)
                 + p['b_ctx_compress'])
    if USE_BIAS:
        fb_idx = obj_preds[hidx] * NUM_OBJ_CLS + obj_preds[tidx]
        rel_dists = rel_dists + p['freq_table'][fb_idx]
    return obj_dists, rel_dists


# ---------------------------------------------------------------------------
if __name__ == "__main__":
    key = jax.random.PRNGKey(0)
    k_param, k_roi, k_union, k_p0, k_p1 = jax.random.split(key, 5)

    params = init_params(k_param)
    fparams = fuse_params(params)

    # 2 images, 5 + 6 = 11 objects, 6 + 8 = 14 relation pairs
    num_objs = [5, 6]
    n_total_obj = sum(num_objs)
    rel_pair_idxs = [
        jax.random.randint(k_p0, (6, 2), 0, num_objs[0], dtype=jnp.int32),
        jax.random.randint(k_p1, (8, 2), 0, num_objs[1], dtype=jnp.int32),
    ]
    n_total_rel = sum(int(p.shape[0]) for p in rel_pair_idxs)

    roi_features = jax.random.normal(k_roi, (n_total_obj, IN_CHANNELS), jnp.float32)
    union_features = jax.random.normal(k_union, (n_total_rel, MLP_HEAD_DIM), jnp.float32)

    obj_dists, rel_dists, add_losses, add_data = transformer_predictor_im_forward(
        fparams, roi_features, union_features, rel_pair_idxs, num_objs)

    for x in obj_dists + rel_dists:
        jax.block_until_ready(x)

    assert [x.shape for x in obj_dists] == [(5, NUM_OBJ_CLS), (6, NUM_OBJ_CLS)]
    assert [x.shape for x in rel_dists] == [(6, NUM_REL_CLS), (8, NUM_REL_CLS)]
    assert add_losses == {} and add_data == {}

    # Numerical cross-check against the pure-JAX reference.
    ref_obj, ref_rel = reference_forward(
        params, roi_features, union_features, rel_pair_idxs, num_objs)
    got_obj = jnp.concatenate(obj_dists, axis=0)
    got_rel = jnp.concatenate(rel_dists, axis=0)
    np.testing.assert_allclose(np.asarray(got_obj), np.asarray(ref_obj),
                               rtol=5e-2, atol=5e-2)
    np.testing.assert_allclose(np.asarray(got_rel), np.asarray(ref_rel),
                               rtol=5e-2, atol=5e-2)

    print("KERNEL_OK")
</pallas_src>

<mosaic_0001>
module attributes {stable_mosaic.version = 11 : i64} {
  func.func @_fused_predictor_kernel(%arg0: i32, %arg1: memref<11x40xf32, #tpu.memory_space<vmem>>, %arg2: memref<14x48xf32, #tpu.memory_space<vmem>>, %arg3: memref<14x1xi32, #tpu.memory_space<vmem>>, %arg4: memref<14x1xi32, #tpu.memory_space<vmem>>, %arg5: memref<40x43xf32, #tpu.memory_space<vmem>>, %arg6: memref<1x43xf32, #tpu.memory_space<vmem>>, %arg7: memref<32x64xf32, #tpu.memory_space<vmem>>, %arg8: memref<1x64xf32, #tpu.memory_space<vmem>>, %arg9: memref<32x80xf32, #tpu.memory_space<vmem>>, %arg10: memref<32x80xf32, #tpu.memory_space<vmem>>, %arg11: memref<1x64xf32, #tpu.memory_space<vmem>>, %arg12: memref<1x16xf32, #tpu.memory_space<vmem>>, %arg13: memref<48x64xf32, #tpu.memory_space<vmem>>, %arg14: memref<1x64xf32, #tpu.memory_space<vmem>>, %arg15: memref<64x16xf32, #tpu.memory_space<vmem>>, %arg16: memref<1x16xf32, #tpu.memory_space<vmem>>, %arg17: memref<121x16xf32, #tpu.memory_space<vmem>>, %arg18: memref<11x11xf32, #tpu.memory_space<vmem>>, %arg19: memref<14x16xf32, #tpu.memory_space<vmem>>) attributes {dimension_semantics = [#tpu.dimension_semantics<arbitrary>], iteration_bounds = array<i64: 1>, scalar_prefetch = 0 : i64, scratch_operands = 0 : i64, tpu.core_type = #tpu.core_type<tc>, window_params = [{pipeline_mode = #tpu.pipeline_mode<synchronous>, transform_indices = @transform_0, window_bounds = array<i64: 11, 40>}, {pipeline_mode = #tpu.pipeline_mode<synchronous>, transform_indices = @transform_1, window_bounds = array<i64: 14, 48>}, {pipeline_mode = #tpu.pipeline_mode<synchronous>, transform_indices = @transform_2, window_bounds = array<i64: 14, 1>}, {pipeline_mode = #tpu.pipeline_mode<synchronous>, transform_indices = @transform_3, window_bounds = array<i64: 14, 1>}, {pipeline_mode = #tpu.pipeline_mode<synchronous>, transform_indices = @transform_4, window_bounds = array<i64: 40, 43>}, {pipeline_mode = #tpu.pipeline_mode<synchronous>, transform_indices = @transform_5, window_bounds = array<i64: 1, 43>}, {pipeline_mode = #tpu.pipeline_mode<synchronous>, transform_indices = @transform_6, window_bounds = array<i64: 32, 64>}, {pipeline_mode = #tpu.pipeline_mode<synchronous>, transform_indices = @transform_7, window_bounds = array<i64: 1, 64>}, {pipeline_mode = #tpu.pipeline_mode<synchronous>, transform_indices = @transform_8, window_bounds = array<i64: 32, 80>}, {pipeline_mode = #tpu.pipeline_mode<synchronous>, transform_indices = @transform_9, window_bounds = array<i64: 32, 80>}, {pipeline_mode = #tpu.pipeline_mode<synchronous>, transform_indices = @transform_10, window_bounds = array<i64: 1, 64>}, {pipeline_mode = #tpu.pipeline_mode<synchronous>, transform_indices = @transform_11, window_bounds = array<i64: 1, 16>}, {pipeline_mode = #tpu.pipeline_mode<synchronous>, transform_indices = @transform_12, window_bounds = array<i64: 48, 64>}, {pipeline_mode = #tpu.pipeline_mode<synchronous>, transform_indices = @transform_13, window_bounds = array<i64: 1, 64>}, {pipeline_mode = #tpu.pipeline_mode<synchronous>, transform_indices = @transform_14, window_bounds = array<i64: 64, 16>}, {pipeline_mode = #tpu.pipeline_mode<synchronous>, transform_indices = @transform_15, window_bounds = array<i64: 1, 16>}, {pipeline_mode = #tpu.pipeline_mode<synchronous>, transform_indices = @transform_16, window_bounds = array<i64: 121, 16>}, {pipeline_mode = #tpu.pipeline_mode<synchronous>, transform_indices = @transform_17, window_bounds = array<i64: 11, 11>}, {pipeline_mode = #tpu.pipeline_mode<synchronous>, transform_indices = @transform_18, window_bounds = array<i64: 14, 16>}]} {
    %c0 = arith.constant 0 : index
    %c0_0 = arith.constant 0 : index
    %0 = vector.load %arg1[%c0, %c0_0] : memref<11x40xf32, #tpu.memory_space<vmem>>, vector<11x40xf32>
    %c0_1 = arith.constant 0 : index
    %c0_2 = arith.constant 0 : index
    %1 = vector.load %arg5[%c0_1, %c0_2] : memref<40x43xf32, #tpu.memory_space<vmem>>, vector<40x43xf32>
    %cst = arith.constant dense<0.000000e+00> : vector<11x43xf32>
    %2 = tpu.matmul %0, %1, %cst {dimension_numbers = #tpu.dot_dimension_numbers<[1], [0], [0], [1], [0, 0, 1, 1], [], []>} : vector<11x40xf32>, vector<40x43xf32>, vector<11x43xf32> -> vector<11x43xf32>
    %c0_3 = arith.constant 0 : index
    %c0_4 = arith.constant 0 : index
    %3 = vector.load %arg6[%c0_3, %c0_4] : memref<1x43xf32, #tpu.memory_space<vmem>>, vector<1x43xf32>
    %4 = vector.broadcast %3 : vector<1x43xf32> to vector<11x43xf32>
    %5 = arith.addf %2, %4 : vector<11x43xf32>
    %6 = vector.extract_strided_slice %5 {offsets = [0, 0], sizes = [11, 11], strides = [1, 1]} : vector<11x43xf32> to vector<11x11xf32>
    %7 = vector.extract_strided_slice %5 {offsets = [0, 11], sizes = [11, 32], strides = [1, 1]} : vector<11x43xf32> to vector<11x32xf32>
    %c0_5 = arith.constant 0 : index
    %c0_6 = arith.constant 0 : index
    %8 = vector.load %arg18[%c0_5, %c0_6] : memref<11x11xf32, #tpu.memory_space<vmem>>, vector<11x11xf32>
    tpu.vector_store %arg18[%c0_5, %c0_6], %6 {strides = array<i32>} : memref<11x11xf32, #tpu.memory_space<vmem>>, vector<11x11xf32>,
    %cst_7 = arith.constant dense<0xFF800000> : vector<11xf32>
    %9 = vector.multi_reduction <maximumf>, %6, %cst_7 [1] : vector<11x11xf32> to vector<11xf32>
    %10 = vector.shape_cast %9 : vector<11xf32> to vector<11x1xf32>
    %11 = tpu.iota {dimensions = array<i32: 1>} : vector<11x11xi32>
    %12 = vector.broadcast %10 : vector<11x1xf32> to vector<11x11xf32>
    %13 = arith.cmpf oeq, %6, %12 : vector<11x11xf32>
    %c11_i32 = arith.constant 11 : i32
    %14 = vector.broadcast %c11_i32 : i32 to vector<11x11xi32>
    %15 = arith.select %13, %11, %14 : vector<11x11xi1>, vector<11x11xi32>
    %cst_8 = arith.constant dense<2147483647> : vector<11xi32>
    %16 = vector.multi_reduction <minsi>, %15, %cst_8 [1] : vector<11x11xi32> to vector<11xi32>
    %17 = vector.shape_cast %16 : vector<11xi32> to vector<11x1xi32>
    %18 = arith.sitofp %17 : vector<11x1xi32> to vector<11x1xf32>
    %c0_9 = arith.constant 0 : index
    %c0_10 = arith.constant 0 : index
    %19 = vector.load %arg7[%c0_9, %c0_10] : memref<32x64xf32, #tpu.memory_space<vmem>>, vector<32x64xf32>
    %cst_11 = arith.constant dense<0.000000e+00> : vector<11x64xf32>
    %20 = tpu.matmul %7, %19, %cst_11 {dimension_numbers = #tpu.dot_dimension_numbers<[1], [0], [0], [1], [0, 0, 1, 1], [], []>} : vector<11x32xf32>, vector<32x64xf32>, vector<11x64xf32> -> vector<11x64xf32>
    %c0_12 = arith.constant 0 : index
    %c0_13 = arith.constant 0 : index
    %21 = vector.load %arg8[%c0_12, %c0_13] : memref<1x64xf32, #tpu.memory_space<vmem>>, vector<1x64xf32>
    %22 = vector.broadcast %21 : vector<1x64xf32> to vector<11x64xf32>
    %23 = arith.addf %20, %22 : vector<11x64xf32>
    %24 = vector.extract_strided_slice %23 {offsets = [0, 0], sizes = [11, 32], strides = [1, 1]} : vector<11x64xf32> to vector<11x32xf32>
    %25 = vector.extract_strided_slice %23 {offsets = [0, 32], sizes = [11, 32], strides = [1, 1]} : vector<11x64xf32> to vector<11x32xf32>
    %26 = tpu.iota {dimensions = array<i32: 1>} : vector<14x11xi32>
    %c0_14 = arith.constant 0 : index
    %c0_15 = arith.constant 0 : index
    %27 = vector.load %arg3[%c0_14, %c0_15] : memref<14x1xi32, #tpu.memory_space<vmem>>, vector<14x1xi32>
    %28 = vector.broadcast %27 : vector<14x1xi32> to vector<14x11xi32>
    %29 = arith.cmpi eq, %28, %26 : vector<14x11xi32>
    %30 = arith.extui %29 : vector<14x11xi1> to vector<14x11xi32>
    %31 = arith.sitofp %30 : vector<14x11xi32> to vector<14x11xf32>
    %c0_16 = arith.constant 0 : index
    %c0_17 = arith.constant 0 : index
    %32 = vector.load %arg4[%c0_16, %c0_17] : memref<14x1xi32, #tpu.memory_space<vmem>>, vector<14x1xi32>
    %33 = vector.broadcast %32 : vector<14x1xi32> to vector<14x11xi32>
    %34 = arith.cmpi eq, %33, %26 : vector<14x11xi32>
    %35 = arith.extui %34 : vector<14x11xi1> to vector<14x11xi32>
    %36 = arith.sitofp %35 : vector<14x11xi32> to vector<14x11xf32>
    %cst_18 = arith.constant dense<0.000000e+00> : vector<14x32xf32>
    %37 = tpu.matmul %31, %24, %cst_18 {dimension_numbers = #tpu.dot_dimension_numbers<[1], [0], [0], [1], [0, 0, 1, 1], [], []>} : vector<14x11xf32>, vector<11x32xf32>, vector<14x32xf32> -> vector<14x32xf32>
    %cst_19 = arith.constant dense<0.000000e+00> : vector<14x32xf32>
    %38 = tpu.matmul %36, %25, %cst_19 {dimension_numbers = #tpu.dot_dimension_numbers<[1], [0], [0], [1], [0, 0, 1, 1], [], []>} : vector<14x11xf32>, vector<11x32xf32>, vector<14x32xf32> -> vector<14x32xf32>
    %39 = vector.shape_cast %18 : vector<11x1xf32> to vector<1x11xf32>
    %40 = vector.broadcast %39 : vector<1x11xf32> to vector<14x11xf32>
    %41 = arith.mulf %31, %40 : vector<14x11xf32>
    %cst_20 = arith.constant dense<0.000000e+00> : vector<14xf32>
    %42 = vector.multi_reduction <add>, %41, %cst_20 [1] : vector<14x11xf32> to vector<14xf32>
    %43 = vector.shape_cast %42 : vector<14xf32> to vector<14x1xf32>
    %44 = vector.shape_cast %18 : vector<11x1xf32> to vector<1x11xf32>
    %45 = vector.broadcast %44 : vector<1x11xf32> to vector<14x11xf32>
    %46 = arith.mulf %36, %45 : vector<14x11xf32>
    %cst_21 = arith.constant dense<0.000000e+00> : vector<14xf32>
    %47 = vector.multi_reduction <add>, %46, %cst_21 [1] : vector<14x11xf32> to vector<14xf32>
    %48 = vector.shape_cast %47 : vector<14xf32> to vector<14x1xf32>
    %cst_22 = arith.constant 1.100000e+01 : f32
    %49 = vector.broadcast %cst_22 : f32 to vector<14x1xf32>
    %50 = arith.mulf %43, %49 : vector<14x1xf32>
    %51 = arith.addf %50, %48 : vector<14x1xf32>
    %52 = arith.fptosi %51 : vector<14x1xf32> to vector<14x1xi32>
    %53 = tpu.iota {dimensions = array<i32: 1>} : vector<14x121xi32>
    %54 = vector.broadcast %52 : vector<14x1xi32> to vector<14x121xi32>
    %55 = arith.cmpi eq, %54, %53 : vector<14x121xi32>
    %56 = arith.extui %55 : vector<14x121xi1> to vector<14x121xi32>
    %57 = arith.sitofp %56 : vector<14x121xi32> to vector<14x121xf32>
    %c0_23 = arith.constant 0 : index
    %c0_24 = arith.constant 0 : index
    %58 = vector.load %arg17[%c0_23, %c0_24] : memref<121x16xf32, #tpu.memory_space<vmem>>, vector<121x16xf32>
    %cst_25 = arith.constant dense<0.000000e+00> : vector<14x16xf32>
    %59 = tpu.matmul %57, %58, %cst_25 {dimension_numbers = #tpu.dot_dimension_numbers<[1], [0], [0], [1], [0, 0, 1, 1], [], []>} : vector<14x121xf32>, vector<121x16xf32>, vector<14x16xf32> -> vector<14x16xf32>
    %c0_26 = arith.constant 0 : index
    %c0_27 = arith.constant 0 : index
    %60 = vector.load %arg9[%c0_26, %c0_27] : memref<32x80xf32, #tpu.memory_space<vmem>>, vector<32x80xf32>
    %cst_28 = arith.constant dense<0.000000e+00> : vector<14x80xf32>
    %61 = tpu.matmul %37, %60, %cst_28 {dimension_numbers = #tpu.dot_dimension_numbers<[1], [0], [0], [1], [0, 0, 1, 1], [], []>} : vector<14x32xf32>, vector<32x80xf32>, vector<14x80xf32> -> vector<14x80xf32>
    %c0_29 = arith.constant 0 : index
    %c0_30 = arith.constant 0 : index
    %62 = vector.load %arg10[%c0_29, %c0_30] : memref<32x80xf32, #tpu.memory_space<vmem>>, vector<32x80xf32>
    %cst_31 = arith.constant dense<0.000000e+00> : vector<14x80xf32>
    %63 = tpu.matmul %38, %62, %cst_31 {dimension_numbers = #tpu.dot_dimension_numbers<[1], [0], [0], [1], [0, 0, 1, 1], [], []>} : vector<14x32xf32>, vector<32x80xf32>, vector<14x80xf32> -> vector<14x80xf32>
    %64 = arith.addf %61, %63 : vector<14x80xf32>
    %65 = vector.extract_strided_slice %64 {offsets = [0, 0], sizes = [14, 64], strides = [1, 1]} : vector<14x80xf32> to vector<14x64xf32>
    %c0_32 = arith.constant 0 : index
    %c0_33 = arith.constant 0 : index
    %66 = vector.load %arg11[%c0_32, %c0_33] : memref<1x64xf32, #tpu.memory_space<vmem>>, vector<1x64xf32>
    %67 = vector.broadcast %66 : vector<1x64xf32> to vector<14x64xf32>
    %68 = arith.addf %65, %67 : vector<14x64xf32>
    %69 = vector.extract_strided_slice %64 {offsets = [0, 64], sizes = [14, 16], strides = [1, 1]} : vector<14x80xf32> to vector<14x16xf32>
    %c0_34 = arith.constant 0 : index
    %c0_35 = arith.constant 0 : index
    %70 = vector.load %arg12[%c0_34, %c0_35] : memref<1x16xf32, #tpu.memory_space<vmem>>, vector<1x16xf32>
    %71 = vector.broadcast %70 : vector<1x16xf32> to vector<14x16xf32>
    %72 = arith.addf %69, %71 : vector<14x16xf32>
    %c0_36 = arith.constant 0 : index
    %c0_37 = arith.constant 0 : index
    %73 = vector.load %arg2[%c0_36, %c0_37] : memref<14x48xf32, #tpu.memory_space<vmem>>, vector<14x48xf32>
    %c0_38 = arith.constant 0 : index
    %c0_39 = arith.constant 0 : index
    %74 = vector.load %arg13[%c0_38, %c0_39] : memref<48x64xf32, #tpu.memory_space<vmem>>, vector<48x64xf32>
    %cst_40 = arith.constant dense<0.000000e+00> : vector<14x64xf32>
    %75 = tpu.matmul %73, %74, %cst_40 {dimension_numbers = #tpu.dot_dimension_numbers<[1], [0], [0], [1], [0, 0, 1, 1], [], []>} : vector<14x48xf32>, vector<48x64xf32>, vector<14x64xf32> -> vector<14x64xf32>
    %c0_41 = arith.constant 0 : index
    %c0_42 = arith.constant 0 : index
    %76 = vector.load %arg14[%c0_41, %c0_42] : memref<1x64xf32, #tpu.memory_space<vmem>>, vector<1x64xf32>
    %77 = vector.broadcast %76 : vector<1x64xf32> to vector<14x64xf32>
    %78 = arith.addf %75, %77 : vector<14x64xf32>
    %79 = arith.mulf %68, %78 : vector<14x64xf32>
    %c0_43 = arith.constant 0 : index
    %c0_44 = arith.constant 0 : index
    %80 = vector.load %arg15[%c0_43, %c0_44] : memref<64x16xf32, #tpu.memory_space<vmem>>, vector<64x16xf32>
    %cst_45 = arith.constant dense<0.000000e+00> : vector<14x16xf32>
    %81 = tpu.matmul %79, %80, %cst_45 {dimension_numbers = #tpu.dot_dimension_numbers<[1], [0], [0], [1], [0, 0, 1, 1], [], []>} : vector<14x64xf32>, vector<64x16xf32>, vector<14x16xf32> -> vector<14x16xf32>
    %c0_46 = arith.constant 0 : index
    %c0_47 = arith.constant 0 : index
    %82 = vector.load %arg16[%c0_46, %c0_47] : memref<1x16xf32, #tpu.memory_space<vmem>>, vector<1x16xf32>
    %83 = vector.broadcast %82 : vector<1x16xf32> to vector<14x16xf32>
    %84 = arith.addf %81, %83 : vector<14x16xf32>
    %85 = arith.addf %84, %72 : vector<14x16xf32>
    %86 = arith.addf %85, %59 : vector<14x16xf32>
    %c0_48 = arith.constant 0 : index
    %c0_49 = arith.constant 0 : index
    %87 = vector.load %arg19[%c0_48, %c0_49] : memref<14x16xf32, #tpu.memory_space<vmem>>, vector<14x16xf32>
    tpu.vector_store %arg19[%c0_48, %c0_49], %86 {strides = array<i32>} : memref<14x16xf32, #tpu.memory_space<vmem>>, vector<14x16xf32>,
    return
  }
  func.func @transform_0(%arg0: i32) -> (i32, i32) {
    %c0_i32 = arith.constant 0 : i32
    %c0_i32_0 = arith.constant 0 : i32
    %c0_i32_1 = arith.constant 0 : i32
    return %c0_i32, %c0_i32_0 : i32, i32
  }
  func.func @transform_1(%arg0: i32) -> (i32, i32) {
    %c0_i32 = arith.constant 0 : i32
    %c0_i32_0 = arith.constant 0 : i32
    %c0_i32_1 = arith.constant 0 : i32
    return %c0_i32, %c0_i32_0 : i32, i32
  }
  func.func @transform_2(%arg0: i32) -> (i32, i32) {
    %c0_i32 = arith.constant 0 : i32
    %c0_i32_0 = arith.constant 0 : i32
    %c0_i32_1 = arith.constant 0 : i32
    return %c0_i32, %c0_i32_0 : i32, i32
  }
  func.func @transform_3(%arg0: i32) -> (i32, i32) {
    %c0_i32 = arith.constant 0 : i32
    %c0_i32_0 = arith.constant 0 : i32
    %c0_i32_1 = arith.constant 0 : i32
    return %c0_i32, %c0_i32_0 : i32, i32
  }
  func.func @transform_4(%arg0: i32) -> (i32, i32) {
    %c0_i32 = arith.constant 0 : i32
    %c0_i32_0 = arith.constant 0 : i32
    %c0_i32_1 = arith.constant 0 : i32
    return %c0_i32, %c0_i32_0 : i32, i32
  }
  func.func @transform_5(%arg0: i32) -> (i32, i32) {
    %c0_i32 = arith.constant 0 : i32
    %c0_i32_0 = arith.constant 0 : i32
    %c0_i32_1 = arith.constant 0 : i32
    return %c0_i32, %c0_i32_0 : i32, i32
  }
  func.func @transform_6(%arg0: i32) -> (i32, i32) {
    %c0_i32 = arith.constant 0 : i32
    %c0_i32_0 = arith.constant 0 : i32
    %c0_i32_1 = arith.constant 0 : i32
    return %c0_i32, %c0_i32_0 : i32, i32
  }
  func.func @transform_7(%arg0: i32) -> (i32, i32) {
    %c0_i32 = arith.constant 0 : i32
    %c0_i32_0 = arith.constant 0 : i32
    %c0_i32_1 = arith.constant 0 : i32
    return %c0_i32, %c0_i32_0 : i32, i32
  }
  func.func @transform_8(%arg0: i32) -> (i32, i32) {
    %c0_i32 = arith.constant 0 : i32
    %c0_i32_0 = arith.constant 0 : i32
    %c0_i32_1 = arith.constant 0 : i32
    return %c0_i32, %c0_i32_0 : i32, i32
  }
  func.func @transform_9(%arg0: i32) -> (i32, i32) {
    %c0_i32 = arith.constant 0 : i32
    %c0_i32_0 = arith.constant 0 : i32
    %c0_i32_1 = arith.constant 0 : i32
    return %c0_i32, %c0_i32_0 : i32, i32
  }
  func.func @transform_10(%arg0: i32) -> (i32, i32) {
    %c0_i32 = arith.constant 0 : i32
    %c0_i32_0 = arith.constant 0 : i32
    %c0_i32_1 = arith.constant 0 : i32
    return %c0_i32, %c0_i32_0 : i32, i32
  }
  func.func @transform_11(%arg0: i32) -> (i32, i32) {
    %c0_i32 = arith.constant 0 : i32
    %c0_i32_0 = arith.constant 0 : i32
    %c0_i32_1 = arith.constant 0 : i32
    return %c0_i32, %c0_i32_0 : i32, i32
  }
  func.func @transform_12(%arg0: i32) -> (i32, i32) {
    %c0_i32 = arith.constant 0 : i32
    %c0_i32_0 = arith.constant 0 : i32
    %c0_i32_1 = arith.constant 0 : i32
    return %c0_i32, %c0_i32_0 : i32, i32
  }
  func.func @transform_13(%arg0: i32) -> (i32, i32) {
    %c0_i32 = arith.constant 0 : i32
    %c0_i32_0 = arith.constant 0 : i32
    %c0_i32_1 = arith.constant 0 : i32
    return %c0_i32, %c0_i32_0 : i32, i32
  }
  func.func @transform_14(%arg0: i32) -> (i32, i32) {
    %c0_i32 = arith.constant 0 : i32
    %c0_i32_0 = arith.constant 0 : i32
    %c0_i32_1 = arith.constant 0 : i32
    return %c0_i32, %c0_i32_0 : i32, i32
  }
  func.func @transform_15(%arg0: i32) -> (i32, i32) {
    %c0_i32 = arith.constant 0 : i32
    %c0_i32_0 = arith.constant 0 : i32
    %c0_i32_1 = arith.constant 0 : i32
    return %c0_i32, %c0_i32_0 : i32, i32
  }
  func.func @transform_16(%arg0: i32) -> (i32, i32) {
    %c0_i32 = arith.constant 0 : i32
    %c0_i32_0 = arith.constant 0 : i32
    %c0_i32_1 = arith.constant 0 : i32
    return %c0_i32, %c0_i32_0 : i32, i32
  }
  func.func @transform_17(%arg0: i32) -> (i32, i32) {
    %c0_i32 = arith.constant 0 : i32
    %c0_i32_0 = arith.constant 0 : i32
    %c0_i32_1 = arith.constant 0 : i32
    return %c0_i32, %c0_i32_0 : i32, i32
  }
  func.func @transform_18(%arg0: i32) -> (i32, i32) {
    %c0_i32 = arith.constant 0 : i32
    %c0_i32_0 = arith.constant 0 : i32
    %c0_i32_1 = arith.constant 0 : i32
    return %c0_i32, %c0_i32_0 : i32, i32
  }
}

</mosaic_0001>

<llo_original>
// kernel: tpu_custom_call.1
$region0: #{tpu_custom_call.1}
  #allocation0 [shape = 'u32[]', space=smem, size = 0x4, offset = 0x4, fixed_abs, tag = 'smem constant byte address 0x4 - core index']
  #allocation1 [shape = 'u32[144,128]{1,0:T(1,128)}', space=vmem, size = 0x12000, scoped, tag = 'internal scratch']
  %s0 = inlined_call_operand.vmem [shape: f32[11,40], index: 0, kind: input, shape index: {}]
  %s1 = inlined_call_operand.vmem [shape: f32[14,48], index: 1, kind: input, shape index: {}]
  %s2 = inlined_call_operand.vmem [shape: s32[14,1], index: 2, kind: input, shape index: {}]
  %s3 = inlined_call_operand.vmem [shape: s32[14,1], index: 3, kind: input, shape index: {}]
  %s4 = inlined_call_operand.vmem [shape: f32[40,43], index: 4, kind: input, shape index: {}]
  %s5 = inlined_call_operand.vmem [shape: f32[1,43], index: 5, kind: input, shape index: {}]
  %s6 = inlined_call_operand.vmem [shape: f32[32,64], index: 6, kind: input, shape index: {}]
  %s7 = inlined_call_operand.vmem [shape: f32[1,64], index: 7, kind: input, shape index: {}]
  %s8 = inlined_call_operand.vmem [shape: f32[32,80], index: 8, kind: input, shape index: {}]
  %s9 = inlined_call_operand.vmem [shape: f32[32,80], index: 9, kind: input, shape index: {}]
  %s10 = inlined_call_operand.vmem [shape: f32[1,64], index: 10, kind: input, shape index: {}]
  %s11 = inlined_call_operand.vmem [shape: f32[1,16], index: 11, kind: input, shape index: {}]
  %s12 = inlined_call_operand.vmem [shape: f32[48,64], index: 12, kind: input, shape index: {}]
  %s13 = inlined_call_operand.vmem [shape: f32[1,64], index: 13, kind: input, shape index: {}]
  %s14 = inlined_call_operand.vmem [shape: f32[64,16], index: 14, kind: input, shape index: {}]
  %s15 = inlined_call_operand.vmem [shape: f32[1,16], index: 15, kind: input, shape index: {}]
  %s16 = inlined_call_operand.vmem [shape: f32[121,16], index: 16, kind: input, shape index: {}]
  %s17 = inlined_call_operand.hbm [shape: f32[11,11], index: 17, kind: output, shape index: {0}]
  %s18 = inlined_call_operand.hbm [shape: f32[14,16], index: 18, kind: output, shape index: {1}]
  %19 = xla_tuple %s17, %s18
  %s20 = sld [smem:[#allocation0]]
  $region86: #{tpu_custom_call.1} parent=0
    _
  %s22 = ssub.s32 1, %s20
  %s23 = scalar_select 0, %s22, %s20
  $region1: #{tpu_custom_call.1} parent=0
    #allocation2 [shape = 'u8[8192]{0}', space=vmem, size = 0x2000, scoped, tag = 'output window, operand 0, single buffered']
    #allocation3 [shape = 's32[1]{0}', space=sflag, size = 0x4, scoped, tag = 'scoped memory for tpu_custom_call.1']
    #allocation4 [shape = 'u8[8192]{0}', space=vmem, size = 0x2000, scoped, tag = 'output window, operand 1, single buffered']
    #allocation5 [shape = 's32[1]{0}', space=sflag, size = 0x4, scoped, tag = 'scoped memory for tpu_custom_call.1']
    %24 = vsyncpa [#allocation3], 0
    %25 = vsyncpa [#allocation5], 0
    // Predicated region
    $region2: #{tpu_custom_call.1} parent=1 // pred_check
      _
    $region3: #{tpu_custom_call.1} parent=1 // pred_check_branch
      %27 = sbr.rel (0) target = $region5
    $region4: #{tpu_custom_call.1} parent=1 // pred_region
      _
    $region5: #{tpu_custom_call.1} parent=1 // pred_fallthru
      _
    // Predicated region
    $region6: #{tpu_custom_call.1} parent=1 // pred_check
      _
    $region7: #{tpu_custom_call.1} parent=1 // pred_check_branch
      %29 = sbr.rel (0) target = $region9
    $region8: #{tpu_custom_call.1} parent=1 // pred_region
      _
    $region9: #{tpu_custom_call.1} parent=1 // pred_fallthru
      _
    // Predicated region
    $region10: #{tpu_custom_call.1} parent=1 // pred_check
      _
    $region11: #{tpu_custom_call.1} parent=1 // pred_check_branch
      %31 = sbr.rel (0) target = $region13
    $region12: #{tpu_custom_call.1} parent=1 // pred_region
      _
    $region13: #{tpu_custom_call.1} parent=1 // pred_fallthru
      _
    // Predicated region
    $region14: #{tpu_custom_call.1} parent=1 // pred_check
      _
    $region15: #{tpu_custom_call.1} parent=1 // pred_check_branch
      %33 = sbr.rel (0) target = $region17
    $region16: #{tpu_custom_call.1} parent=1 // pred_region
      _
    $region17: #{tpu_custom_call.1} parent=1 // pred_fallthru
      _
    // Predicated region
    $region18: #{tpu_custom_call.1} parent=1 // pred_check
      _
    $region19: #{tpu_custom_call.1} parent=1 // pred_check_branch
      %35 = sbr.rel (0) target = $region21
    $region20: #{tpu_custom_call.1} parent=1 // pred_region
      _
    $region21: #{tpu_custom_call.1} parent=1 // pred_fallthru
      _
    // Predicated region
    $region22: #{tpu_custom_call.1} parent=1 // pred_check
      _
    $region23: #{tpu_custom_call.1} parent=1 // pred_check_branch
      %37 = sbr.rel (0) target = $region25
    $region24: #{tpu_custom_call.1} parent=1 // pred_region
      _
    $region25: #{tpu_custom_call.1} parent=1 // pred_fallthru
      _
    // Predicated region
    $region26: #{tpu_custom_call.1} parent=1 // pred_check
      _
    $region27: #{tpu_custom_call.1} parent=1 // pred_check_branch
      %39 = sbr.rel (0) target = $region29
    $region28: #{tpu_custom_call.1} parent=1 // pred_region
      _
    $region29: #{tpu_custom_call.1} parent=1 // pred_fallthru
      _
    // Predicated region
    $region30: #{tpu_custom_call.1} parent=1 // pred_check
      _
    $region31: #{tpu_custom_call.1} parent=1 // pred_check_branch
      %41 = sbr.rel (0) target = $region33
    $region32: #{tpu_custom_call.1} parent=1 // pred_region
      _
    $region33: #{tpu_custom_call.1} parent=1 // pred_fallthru
      _
    // Predicated region
    $region34: #{tpu_custom_call.1} parent=1 // pred_check
      _
    $region35: #{tpu_custom_call.1} parent=1 // pred_check_branch
      %43 = sbr.rel (0) target = $region37
    $region36: #{tpu_custom_call.1} parent=1 // pred_region
      _
    $region37: #{tpu_custom_call.1} parent=1 // pred_fallthru
      _
    // Predicated region
    $region38: #{tpu_custom_call.1} parent=1 // pred_check
      _
    $region39: #{tpu_custom_call.1} parent=1 // pred_check_branch
      %45 = sbr.rel (0) target = $region41
    $region40: #{tpu_custom_call.1} parent=1 // pred_region
      _
    $region41: #{tpu_custom_call.1} parent=1 // pred_fallthru
      _
    // Predicated region
    $region42: #{tpu_custom_call.1} parent=1 // pred_check
      _
    $region43: #{tpu_custom_call.1} parent=1 // pred_check_branch
      %47 = sbr.rel (0) target = $region45
    $region44: #{tpu_custom_call.1} parent=1 // pred_region
      _
    $region45: #{tpu_custom_call.1} parent=1 // pred_fallthru
      _
    // Predicated region
    $region46: #{tpu_custom_call.1} parent=1 // pred_check
      _
    $region47: #{tpu_custom_call.1} parent=1 // pred_check_branch
      %49 = sbr.rel (0) target = $region49
    $region48: #{tpu_custom_call.1} parent=1 // pred_region
      _
    $region49: #{tpu_custom_call.1} parent=1 // pred_fallthru
      _
    // Predicated region
    $region50: #{tpu_custom_call.1} parent=1 // pred_check
      _
    $region51: #{tpu_custom_call.1} parent=1 // pred_check_branch
      %51 = sbr.rel (0) target = $region53
    $region52: #{tpu_custom_call.1} parent=1 // pred_region
      _
    $region53: #{tpu_custom_call.1} parent=1 // pred_fallthru
      _
    // Predicated region
    $region54: #{tpu_custom_call.1} parent=1 // pred_check
      _
    $region55: #{tpu_custom_call.1} parent=1 // pred_check_branch
      %53 = sbr.rel (0) target = $region57
    $region56: #{tpu_custom_call.1} parent=1 // pred_region
      _
    $region57: #{tpu_custom_call.1} parent=1 // pred_fallthru
      _
    // Predicated region
    $region58: #{tpu_custom_call.1} parent=1 // pred_check
      _
    $region59: #{tpu_custom_call.1} parent=1 // pred_check_branch
      %55 = sbr.rel (0) target = $region61
    $region60: #{tpu_custom_call.1} parent=1 // pred_region
      _
    $region61: #{tpu_custom_call.1} parent=1 // pred_fallthru
      _
    // Predicated region
    $region62: #{tpu_custom_call.1} parent=1 // pred_check
      _
    $region63: #{tpu_custom_call.1} parent=1 // pred_check_branch
      %57 = sbr.rel (0) target = $region65
    $region64: #{tpu_custom_call.1} parent=1 // pred_region
      _
    $region65: #{tpu_custom_call.1} parent=1 // pred_fallthru
      _
    // Predicated region
    $region66: #{tpu_custom_call.1} parent=1 // pred_check
      _
    $region67: #{tpu_custom_call.1} parent=1 // pred_check_branch
      %59 = sbr.rel (0) target = $region69
    $region68: #{tpu_custom_call.1} parent=1 // pred_region
      _
    $region69: #{tpu_custom_call.1} parent=1 // pred_fallthru
      _
    %v60 = vld [vmem:[%s0] sm:$0xff]
    %v61 = vld [vmem:[%s0 + $0x8] sm:$0x7]
    %v62 = vld [vmem:[%s4] sm:$0xff]
    %v63 = vld [vmem:[%s4 + $0x8] sm:$0xff]
    %v64 = vld [vmem:[%s4 + $0x10] sm:$0xff]
    %v65 = vld [vmem:[%s4 + $0x18] sm:$0xff]
    %v66 = vld [vmem:[%s4 + $0x20] sm:$0xff]
    %v67 = vld [vmem:[%s5] sm:$0x1]
    %v69 = vlaneseq
    %v70 = vshrl.u32 %v69, 7
    %v71 = vsub.s32 0, %v70
    %v72 = vrot.slane %v67, %v71
    %vm74 = vcmask 326656
    %v76 = vsel %vm74, %v60, 0
    %v79 = vsel %vm74, %v61, 0
    %81 = vmatprep.subr.mxu0 0.0
    %82 = vmatpush1.msra.mxu0 0.0
    %83 = vmatprep.subr.mxu0 0.0
    %84 = vmatpush1.msra.mxu0 0.0
    %85 = vmatprep.subr.mxu0 0.0
    %86 = vmatpush1.msra.mxu0 0.0
    %87 = vmatprep.subr.mxu0 0.0
    %88 = vmatpush1.msra.mxu0 0.0
    %89 = vmatprep.subr.mxu0 0.0
    %90 = vmatpush1.msra.mxu0 0.0
    %91 = vmatprep.subr.mxu0 0.0
    %92 = vmatpush1.msra.mxu0 0.0
    %93 = vmatprep.subr.mxu0 0.0
    %94 = vmatpush1.msra.mxu0 0.0
    %95 = vmatprep.subr.mxu0 0.0
    %96 = vmatpush1.msra.mxu0 0.0
    %97 = vmatprep.subr.mxu0 0.0
    %98 = vmatpush1.msra.mxu0 0.0
    %99 = vmatprep.subr.mxu0 0.0
    %100 = vmatpush1.msra.mxu0 0.0
    %101 = vmatprep.subr.mxu0 0.0
    %102 = vmatpush1.msra.mxu0 0.0
    %103 = vmatprep.subr.mxu0 0.0
    %104 = vmatpush1.msra.mxu0 %v66
    %105 = vmatprep.subr.mxu0 0.0
    %106 = vmatpush1.msra.mxu0 %v65
    %107 = vmatprep.subr.mxu0 0.0
    %108 = vmatpush1.msra.mxu0 %v64
    %109 = vmatprep.subr.mxu0 0.0
    %110 = vmatpush1.msra.mxu0 %v63
    %111 = vmatprep.subr.mxu0 0.0
    %112 = vmatpush1.msra.mxu0 %v62
    %113 = vmatprep.subr.mxu0 0.0
    %114 = vmatpush2.msra.mxu0 0.0
    %115 = vmatprep.subr.mxu0 0.0
    %116 = vmatpush2.msra.mxu0 0.0
    %117 = vmatprep.subr.mxu0 0.0
    %118 = vmatpush2.msra.mxu0 0.0
    %119 = vmatprep.subr.mxu0 0.0
    %120 = vmatpush2.msra.mxu0 0.0
    %121 = vmatprep.subr.mxu0 0.0
    %122 = vmatpush2.msra.mxu0 0.0
    %123 = vmatprep.subr.mxu0 0.0
    %124 = vmatpush2.msra.mxu0 0.0
    %125 = vmatprep.subr.mxu0 0.0
    %126 = vmatpush2.msra.mxu0 0.0
    %127 = vmatprep.subr.mxu0 0.0
    %128 = vmatpush2.msra.mxu0 0.0
    %129 = vmatprep.subr.mxu0 0.0
    %130 = vmatpush2.msra.mxu0 0.0
    %131 = vmatprep.subr.mxu0 0.0
    %132 = vmatpush2.msra.mxu0 0.0
    %133 = vmatprep.subr.mxu0 0.0
    %134 = vmatpush2.msra.mxu0 0.0
    %135 = vmatprep.subr.mxu0 0.0
    %136 = vmatpush2.msra.mxu0 0.0
    %137 = vmatprep.subr.mxu0 0.0
    %138 = vmatpush2.msra.mxu0 0.0
    %139 = vmatprep.subr.mxu0 0.0
    %140 = vmatpush2.msra.mxu0 0.0
    %141 = vmatprep.subr.mxu0 0.0
    %142 = vmatpush2.msra.mxu0 0.0
    %143 = vmatprep.subr.mxu0 0.0
    %144 = vmatpush2.msra.mxu0 0.0
    %145 = vmatprep.mubr.f32.mxu0 0.0
    %146 = vmatmul.mubr.f32.gmra.mxu0 %v76
    %v147 = vpop.f32.mrf.mxu0
    %v148 = vadd.f32 %v72, %v147
    %v149 = vpop.f32.mrf.mxu0
    %150 = vmatprep.mubr.f32.mxu0 0.0
    %151 = vmatmul.mubr.f32.gmra.mxu0 %v79
    %v152 = vpop.f32.mrf.mxu0
    %v153 = vadd.f32 %v72, %v152
    %v154 = vpop.f32.mrf.mxu0
    %155 = vdwg.mxu0
    %vm156 = vcmask 89088
    %157 = vst.msk [vmem:[#allocation2] sm:$0xff] %vm156, %v148
    %vm158 = vcmask 83968
    %159 = vst.msk [vmem:[#allocation2 + $0x8] sm:$0x7] %vm158, %v153
    %v160 = vsel %vm156, %v148, -inf
    %161 = vmax.xlane.f32.xlu0 %v160
    %v162 = vpop.xlane.xlu0 %161
    %v163 = vsel %vm158, %v153, -inf
    %164 = vmax.xlane.f32.xlu0 %v163
    %v165 = vpop.xlane.xlu0 %164
    %v166 = vlaneseq
    %v167 = vand.u32 %v166, 127
    %vm168 = vcmp.eq.f32.partialorder %v148, %v162
    %vm169 = vcmp.eq.f32.partialorder %v153, %v165
    %v170 = vsel %vm168, %v167, 11
    %v171 = vsel %vm169, %v167, 11
    %v172 = vsel %vm156, %v170, 2147483647
    %v173 = vand.u32 %v172, 65535
    %v174 = vshra.s32 %v172, 16
    %v175 = vcvt.s32.f32 %v173
    %v176 = vcvt.s32.f32 %v174
    %177 = vmin.xlane.f32.xlu0 %v176
    %v178 = vpop.xlane.xlu0 %177
    %vm179 = vcmp.eq.f32.partialorder %v176, %v178
    %v180 = vsel %vm179, %v175, inf
    %181 = vmin.xlane.f32.xlu0 %v180
    %v182 = vpop.xlane.xlu0 %181
    %v183 = vcvt.f32.s32 %v182
    %v184 = vcvt.f32.s32 %v178
    %v185 = vshll.u32 %v184, 16
    %v186 = vadd.s32 %v185, %v183
    %v187 = vsel %vm158, %v171, 2147483647
    %v188 = vand.u32 %v187, 65535
    %v189 = vshra.s32 %v187, 16
    %v190 = vcvt.s32.f32 %v188
    %v191 = vcvt.s32.f32 %v189
    %192 = vmin.xlane.f32.xlu0 %v191
    %v193 = vpop.xlane.xlu0 %192
    %vm194 = vcmp.eq.f32.partialorder %v191, %v193
    %v195 = vsel %vm194, %v190, inf
    %196 = vmin.xlane.f32.xlu0 %v195
    %v197 = vpop.xlane.xlu0 %196
    %v198 = vcvt.f32.s32 %v197
    %v199 = vcvt.f32.s32 %v193
    %v200 = vshll.u32 %v199, 16
    %v201 = vadd.s32 %v200, %v198
    %v202 = vcvt.s32.f32 %v186
    %v203 = vcvt.s32.f32 %v201
    %v204 = vld [vmem:[%s6] sm:$0xff]
    %v205 = vld [vmem:[%s6 + $0x8] sm:$0xff]
    %v206 = vld [vmem:[%s6 + $0x10] sm:$0xff]
    %v207 = vld [vmem:[%s6 + $0x18] sm:$0xff]
    %v208 = vld [vmem:[%s7] sm:$0x1]
    %v210 = vlaneseq
    %v211 = vshrl.u32 %v210, 7
    %v212 = vsub.s32 0, %v211
    %v213 = vrot.slane %v208, %v212
    %217 = vrot.lane.b32.xlu0 %v148, 117
    %v218 = vpop.permute.xlu0 %217
    %219 = vrot.lane.b32.xlu0 %v153, 117
    %v220 = vpop.permute.xlu0 %219
    %vm221 = vcmask 261120
    %v222 = vsel %vm221, %v218, 0
    %v224 = vsel %vm221, %v220, 0
    %226 = vmatprep.subr.mxu0 0.0
    %227 = vmatpush1.msra.mxu0 0.0
    %228 = vmatprep.subr.mxu0 0.0
    %229 = vmatpush1.msra.mxu0 0.0
    %230 = vmatprep.subr.mxu0 0.0
    %231 = vmatpush1.msra.mxu0 0.0
    %232 = vmatprep.subr.mxu0 0.0
    %233 = vmatpush1.msra.mxu0 0.0
    %234 = vmatprep.subr.mxu0 0.0
    %235 = vmatpush1.msra.mxu0 0.0
    %236 = vmatprep.subr.mxu0 0.0
    %237 = vmatpush1.msra.mxu0 0.0
    %238 = vmatprep.subr.mxu0 0.0
    %239 = vmatpush1.msra.mxu0 0.0
    %240 = vmatprep.subr.mxu0 0.0
    %241 = vmatpush1.msra.mxu0 0.0
    %242 = vmatprep.subr.mxu0 0.0
    %243 = vmatpush1.msra.mxu0 0.0
    %244 = vmatprep.subr.mxu0 0.0
    %245 = vmatpush1.msra.mxu0 0.0
    %246 = vmatprep.subr.mxu0 0.0
    %247 = vmatpush1.msra.mxu0 0.0
    %248 = vmatprep.subr.mxu0 0.0
    %249 = vmatpush1.msra.mxu0 0.0
    %250 = vmatprep.subr.mxu0 0.0
    %251 = vmatpush1.msra.mxu0 %v207
    %252 = vmatprep.subr.mxu0 0.0
    %253 = vmatpush1.msra.mxu0 %v206
    %254 = vmatprep.subr.mxu0 0.0
    %255 = vmatpush1.msra.mxu0 %v205
    %256 = vmatprep.subr.mxu0 0.0
    %257 = vmatpush1.msra.mxu0 %v204
    %258 = vmatprep.subr.mxu0 0.0
    %259 = vmatpush2.msra.mxu0 0.0
    %260 = vmatprep.subr.mxu0 0.0
    %261 = vmatpush2.msra.mxu0 0.0
    %262 = vmatprep.subr.mxu0 0.0
    %263 = vmatpush2.msra.mxu0 0.0
    %264 = vmatprep.subr.mxu0 0.0
    %265 = vmatpush2.msra.mxu0 0.0
    %266 = vmatprep.subr.mxu0 0.0
    %267 = vmatpush2.msra.mxu0 0.0
    %268 = vmatprep.subr.mxu0 0.0
    %269 = vmatpush2.msra.mxu0 0.0
    %270 = vmatprep.subr.mxu0 0.0
    %271 = vmatpush2.msra.mxu0 0.0
    %272 = vmatprep.subr.mxu0 0.0
    %273 = vmatpush2.msra.mxu0 0.0
    %274 = vmatprep.subr.mxu0 0.0
    %275 = vmatpush2.msra.mxu0 0.0
    %276 = vmatprep.subr.mxu0 0.0
    %277 = vmatpush2.msra.mxu0 0.0
    %278 = vmatprep.subr.mxu0 0.0
    %279 = vmatpush2.msra.mxu0 0.0
    %280 = vmatprep.subr.mxu0 0.0
    %281 = vmatpush2.msra.mxu0 0.0
    %282 = vmatprep.subr.mxu0 0.0
    %283 = vmatpush2.msra.mxu0 0.0
    %284 = vmatprep.subr.mxu0 0.0
    %285 = vmatpush2.msra.mxu0 0.0
    %286 = vmatprep.subr.mxu0 0.0
    %287 = vmatpush2.msra.mxu0 0.0
    %288 = vmatprep.subr.mxu0 0.0
    %289 = vmatpush2.msra.mxu0 0.0
    %290 = vmatprep.mubr.f32.mxu0 0.0
    %291 = vmatmul.mubr.f32.gmra.mxu0 %v222
    %v292 = vpop.f32.mrf.mxu0
    %v293 = vadd.f32 %v213, %v292
    %v294 = vpop.f32.mrf.mxu0
    %295 = vmatprep.mubr.f32.mxu0 0.0
    %296 = vmatmul.mubr.f32.gmra.mxu0 %v224
    %v297 = vpop.f32.mrf.mxu0
    %v298 = vadd.f32 %v213, %v297
    %v299 = vpop.f32.mrf.mxu0
    %300 = vdwg.mxu0
    %v301 = vld [vmem:[%s2] sm:$0xff]
    %v302 = vld [vmem:[%s2 + $0x8] sm:$0x3f]
    %303 = vset.pattern.permute.xlu0 0
    %304 = vperm.xlu0 %303, %v301
    %v305 = vpop.permute.xlu0 %304
    %306 = vset.pattern.permute.xlu0 0
    %307 = vperm.xlu0 %306, %v302
    %v308 = vpop.permute.xlu0 %307
    %vm309 = vcmp.eq.s32.totalorder %v305, %v167
    %vm310 = vcmp.eq.s32.totalorder %v308, %v167
    %v311 = vsel %vm309, 1, 0
    %v312 = vsel %vm310, 1, 0
    %v313 = vcvt.s32.f32 %v311
    %v314 = vcvt.s32.f32 %v312
    %v315 = vld [vmem:[%s3] sm:$0xff]
    %v316 = vld [vmem:[%s3 + $0x8] sm:$0x3f]
    %317 = vset.pattern.permute.xlu0 0
    %318 = vperm.xlu0 %317, %v315
    %v319 = vpop.permute.xlu0 %318
    %320 = vset.pattern.permute.xlu0 0
    %321 = vperm.xlu0 %320, %v316
    %v322 = vpop.permute.xlu0 %321
    %vm323 = vcmp.eq.s32.totalorder %v319, %v167
    %vm324 = vcmp.eq.s32.totalorder %v322, %v167
    %v325 = vsel %vm323, 1, 0
    %v326 = vsel %vm324, 1, 0
    %v327 = vcvt.s32.f32 %v325
    %v328 = vcvt.s32.f32 %v326
    %v330 = vsel %vm156, %v313, 0
    %v333 = vsel %vm156, %v314, 0
    %vm335 = vcmask 1042432
    %v337 = vsel %vm335, %v298, 0
    %339 = vmatprep.subr.mxu0 0.0
    %340 = vmatpush1.msra.mxu0 0.0
    %341 = vmatprep.subr.mxu0 0.0
    %342 = vmatpush1.msra.mxu0 0.0
    %343 = vmatprep.subr.mxu0 0.0
    %344 = vmatpush1.msra.mxu0 0.0
    %345 = vmatprep.subr.mxu0 0.0
    %346 = vmatpush1.msra.mxu0 0.0
    %347 = vmatprep.subr.mxu0 0.0
    %348 = vmatpush1.msra.mxu0 0.0
    %349 = vmatprep.subr.mxu0 0.0
    %350 = vmatpush1.msra.mxu0 0.0
    %351 = vmatprep.subr.mxu0 0.0
    %352 = vmatpush1.msra.mxu0 0.0
    %353 = vmatprep.subr.mxu0 0.0
    %354 = vmatpush1.msra.mxu0 0.0
    %355 = vmatprep.subr.mxu0 0.0
    %356 = vmatpush1.msra.mxu0 0.0
    %357 = vmatprep.subr.mxu0 0.0
    %358 = vmatpush1.msra.mxu0 0.0
    %359 = vmatprep.subr.mxu0 0.0
    %360 = vmatpush1.msra.mxu0 0.0
    %361 = vmatprep.subr.mxu0 0.0
    %362 = vmatpush1.msra.mxu0 0.0
    %363 = vmatprep.subr.mxu0 0.0
    %364 = vmatpush1.msra.mxu0 0.0
    %365 = vmatprep.subr.mxu0 0.0
    %366 = vmatpush1.msra.mxu0 0.0
    %367 = vmatprep.subr.mxu0 0.0
    %368 = vmatpush1.msra.mxu0 %v337
    %369 = vmatprep.subr.mxu0 0.0
    %370 = vmatpush1.msra.mxu0 %v293
    %371 = vmatprep.subr.mxu0 0.0
    %372 = vmatpush2.msra.mxu0 0.0
    %373 = vmatprep.subr.mxu0 0.0
    %374 = vmatpush2.msra.mxu0 0.0
    %375 = vmatprep.subr.mxu0 0.0
    %376 = vmatpush2.msra.mxu0 0.0
    %377 = vmatprep.subr.mxu0 0.0
    %378 = vmatpush2.msra.mxu0 0.0
    %379 = vmatprep.subr.mxu0 0.0
    %380 = vmatpush2.msra.mxu0 0.0
    %381 = vmatprep.subr.mxu0 0.0
    %382 = vmatpush2.msra.mxu0 0.0
    %383 = vmatprep.subr.mxu0 0.0
    %384 = vmatpush2.msra.mxu0 0.0
    %385 = vmatprep.subr.mxu0 0.0
    %386 = vmatpush2.msra.mxu0 0.0
    %387 = vmatprep.subr.mxu0 0.0
    %388 = vmatpush2.msra.mxu0 0.0
    %389 = vmatprep.subr.mxu0 0.0
    %390 = vmatpush2.msra.mxu0 0.0
    %391 = vmatprep.subr.mxu0 0.0
    %392 = vmatpush2.msra.mxu0 0.0
    %393 = vmatprep.subr.mxu0 0.0
    %394 = vmatpush2.msra.mxu0 0.0
    %395 = vmatprep.subr.mxu0 0.0
    %396 = vmatpush2.msra.mxu0 0.0
    %397 = vmatprep.subr.mxu0 0.0
    %398 = vmatpush2.msra.mxu0 0.0
    %399 = vmatprep.subr.mxu0 0.0
    %400 = vmatpush2.msra.mxu0 0.0
    %401 = vmatprep.subr.mxu0 0.0
    %402 = vmatpush2.msra.mxu0 0.0
    %403 = vmatprep.mubr.f32.mxu0 0.0
    %404 = vmatmul.mubr.f32.gmra.mxu0 %v330
    %v405 = vpop.f32.mrf.mxu0
    %v406 = vadd.f32 0.0, %v405
    %v407 = vpop.f32.mrf.mxu0
    %408 = vmatprep.mubr.f32.mxu0 0.0
    %409 = vmatmul.mubr.f32.gmra.mxu0 %v333
    %v410 = vpop.f32.mrf.mxu0
    %v411 = vadd.f32 0.0, %v410
    %v412 = vpop.f32.mrf.mxu0
    %413 = vdwg.mxu0
    %415 = vrot.lane.b32.xlu0 %v293, 96
    %v416 = vpop.permute.xlu0 %415
    %417 = vrot.lane.b32.xlu0 %v298, 96
    %v418 = vpop.permute.xlu0 %417
    %v421 = vsel %vm156, %v327, 0
    %v424 = vsel %vm156, %v328, 0
    %v426 = vsel %vm335, %v418, 0
    %428 = vmatprep.subr.mxu0 0.0
    %429 = vmatpush1.msra.mxu0 0.0
    %430 = vmatprep.subr.mxu0 0.0
    %431 = vmatpush1.msra.mxu0 0.0
    %432 = vmatprep.subr.mxu0 0.0
    %433 = vmatpush1.msra.mxu0 0.0
    %434 = vmatprep.subr.mxu0 0.0
    %435 = vmatpush1.msra.mxu0 0.0
    %436 = vmatprep.subr.mxu0 0.0
    %437 = vmatpush1.msra.mxu0 0.0
    %438 = vmatprep.subr.mxu0 0.0
    %439 = vmatpush1.msra.mxu0 0.0
    %440 = vmatprep.subr.mxu0 0.0
    %441 = vmatpush1.msra.mxu0 0.0
    %442 = vmatprep.subr.mxu0 0.0
    %443 = vmatpush1.msra.mxu0 0.0
    %444 = vmatprep.subr.mxu0 0.0
    %445 = vmatpush1.msra.mxu0 0.0
    %446 = vmatprep.subr.mxu0 0.0
    %447 = vmatpush1.msra.mxu0 0.0
    %448 = vmatprep.subr.mxu0 0.0
    %449 = vmatpush1.msra.mxu0 0.0
    %450 = vmatprep.subr.mxu0 0.0
    %451 = vmatpush1.msra.mxu0 0.0
    %452 = vmatprep.subr.mxu0 0.0
    %453 = vmatpush1.msra.mxu0 0.0
    %454 = vmatprep.subr.mxu0 0.0
    %455 = vmatpush1.msra.mxu0 0.0
    %456 = vmatprep.subr.mxu0 0.0
    %457 = vmatpush1.msra.mxu0 %v426
    %458 = vmatprep.subr.mxu0 0.0
    %459 = vmatpush1.msra.mxu0 %v416
    %460 = vmatprep.subr.mxu0 0.0
    %461 = vmatpush2.msra.mxu0 0.0
    %462 = vmatprep.subr.mxu0 0.0
    %463 = vmatpush2.msra.mxu0 0.0
    %464 = vmatprep.subr.mxu0 0.0
    %465 = vmatpush2.msra.mxu0 0.0
    %466 = vmatprep.subr.mxu0 0.0
    %467 = vmatpush2.msra.mxu0 0.0
    %468 = vmatprep.subr.mxu0 0.0
    %469 = vmatpush2.msra.mxu0 0.0
    %470 = vmatprep.subr.mxu0 0.0
    %471 = vmatpush2.msra.mxu0 0.0
    %472 = vmatprep.subr.mxu0 0.0
    %473 = vmatpush2.msra.mxu0 0.0
    %474 = vmatprep.subr.mxu0 0.0
    %475 = vmatpush2.msra.mxu0 0.0
    %476 = vmatprep.subr.mxu0 0.0
    %477 = vmatpush2.msra.mxu0 0.0
    %478 = vmatprep.subr.mxu0 0.0
    %479 = vmatpush2.msra.mxu0 0.0
    %480 = vmatprep.subr.mxu0 0.0
    %481 = vmatpush2.msra.mxu0 0.0
    %482 = vmatprep.subr.mxu0 0.0
    %483 = vmatpush2.msra.mxu0 0.0
    %484 = vmatprep.subr.mxu0 0.0
    %485 = vmatpush2.msra.mxu0 0.0
    %486 = vmatprep.subr.mxu0 0.0
    %487 = vmatpush2.msra.mxu0 0.0
    %488 = vmatprep.subr.mxu0 0.0
    %489 = vmatpush2.msra.mxu0 0.0
    %490 = vmatprep.subr.mxu0 0.0
    %491 = vmatpush2.msra.mxu0 0.0
    %492 = vmatprep.mubr.f32.mxu0 0.0
    %493 = vmatmul.mubr.f32.gmra.mxu0 %v421
    %v494 = vpop.f32.mrf.mxu0
    %v495 = vadd.f32 0.0, %v494
    %v496 = vpop.f32.mrf.mxu0
    %497 = vmatprep.mubr.f32.mxu0 0.0
    %498 = vmatmul.mubr.f32.gmra.mxu0 %v424
    %v499 = vpop.f32.mrf.mxu0
    %v500 = vadd.f32 0.0, %v499
    %v501 = vpop.f32.mrf.mxu0
    %502 = vdwg.mxu0
    %v505 = vlaneseq
    %v506 = vshrl.u32 %v505, 7
    %v507 = vsub.s32 %v167, %v506
    %v508 = vrot.slane %v202, %v507
    %v509 = vadd.s32 %v167, 4294967288
    %v510 = vlaneseq
    %v511 = vshrl.u32 %v510, 7
    %v512 = vsub.s32 %v509, %v511
    %v513 = vrot.slane %v203, %v512
    %vm514 = vcmask 130112
    %v515 = vsel %vm514, %v513, %v508
    %vm516 = vcmask 1042434
    %v517 = vsel %vm516, %v515, %v515
    %vm518 = vcmask 1043459
    %v519 = vsel %vm518, %v515, %v517
    %vm520 = vcmask 1044484
    %v521 = vsel %vm520, %v515, %v519
    %vm522 = vcmask 1045509
    %v523 = vsel %vm522, %v515, %v521
    %vm524 = vcmask 1046534
    %v525 = vsel %vm524, %v515, %v523
    %vm526 = vcmask 1047559
    %v527 = vsel %vm526, %v515, %v525
    %v530 = vmul.f32 %v313, %v527
    %v531 = vmul.f32 %v314, %v523
    %v532 = vsel %vm156, %v530, 0.0
    %533 = vadd.xlane.f32.xlu0 %v532
    %v534 = vpop.xlane.xlu0 %533
    %vm535 = vcmask 87040
    %v536 = vsel %vm535, %v531, 0.0
    %537 = vadd.xlane.f32.xlu0 %v536
    %v538 = vpop.xlane.xlu0 %537
    %v539 = vmul.f32 %v327, %v527
    %v540 = vmul.f32 %v328, %v523
    %v541 = vsel %vm156, %v539, 0.0
    %542 = vadd.xlane.f32.xlu0 %v541
    %v543 = vpop.xlane.xlu0 %542
    %v544 = vsel %vm535, %v540, 0.0
    %545 = vadd.xlane.f32.xlu0 %v544
    %v546 = vpop.xlane.xlu0 %545
    %v547 = vmul.f32 %v534, 11.0
    %v548 = vmul.f32 %v538, 11.0
    %v549 = vadd.f32 %v547, %v543
    %v550 = vadd.f32 %v548, %v546
    %v551 = vcvt.f32.s32.to.zero.pseudo %v549
    %v552 = vcvt.f32.s32.to.zero.pseudo %v550
    %vm553 = vcmp.eq.s32.totalorder %v551, %v167
    %vm554 = vcmp.eq.s32.totalorder %v552, %v167
    %v555 = vsel %vm553, 1, 0
    %v556 = vsel %vm554, 1, 0
    %v557 = vcvt.s32.f32 %v555
    %v558 = vcvt.s32.f32 %v556
    %v559 = vld [vmem:[%s16] sm:$0xff]
    %v560 = vld [vmem:[%s16 + $0x8] sm:$0xff]
    %v561 = vld [vmem:[%s16 + $0x10] sm:$0xff]
    %v562 = vld [vmem:[%s16 + $0x18] sm:$0xff]
    %v563 = vld [vmem:[%s16 + $0x20] sm:$0xff]
    %v564 = vld [vmem:[%s16 + $0x28] sm:$0xff]
    %v565 = vld [vmem:[%s16 + $0x30] sm:$0xff]
    %v566 = vld [vmem:[%s16 + $0x38] sm:$0xff]
    %v567 = vld [vmem:[%s16 + $0x40] sm:$0xff]
    %v568 = vld [vmem:[%s16 + $0x48] sm:$0xff]
    %v569 = vld [vmem:[%s16 + $0x50] sm:$0xff]
    %v570 = vld [vmem:[%s16 + $0x58] sm:$0xff]
    %v571 = vld [vmem:[%s16 + $0x60] sm:$0xff]
    %v572 = vld [vmem:[%s16 + $0x68] sm:$0xff]
    %v573 = vld [vmem:[%s16 + $0x70] sm:$0xff]
    %v574 = vld [vmem:[%s16 + $0x78] sm:$0x1]
    %vm575 = vcmask 990208
    %v577 = vsel %vm575, %v557, 0
    %v580 = vsel %vm575, %v558, 0
    %vm582 = vcmask 1040384
    %v584 = vsel %vm582, %v574, 0
    %586 = vmatprep.subr.mxu0 0.0
    %587 = vmatpush1.msra.mxu0 %v584
    %588 = vmatprep.subr.mxu0 0.0
    %589 = vmatpush1.msra.mxu0 %v573
    %590 = vmatprep.subr.mxu0 0.0
    %591 = vmatpush1.msra.mxu0 %v572
    %592 = vmatprep.subr.mxu0 0.0
    %593 = vmatpush1.msra.mxu0 %v571
    %594 = vmatprep.subr.mxu0 0.0
    %595 = vmatpush1.msra.mxu0 %v570
    %596 = vmatprep.subr.mxu0 0.0
    %597 = vmatpush1.msra.mxu0 %v569
    %598 = vmatprep.subr.mxu0 0.0
    %599 = vmatpush1.msra.mxu0 %v568
    %600 = vmatprep.subr.mxu0 0.0
    %601 = vmatpush1.msra.mxu0 %v567
    %602 = vmatprep.subr.mxu0 0.0
    %603 = vmatpush1.msra.mxu0 %v566
    %604 = vmatprep.subr.mxu0 0.0
    %605 = vmatpush1.msra.mxu0 %v565
    %606 = vmatprep.subr.mxu0 0.0
    %607 = vmatpush1.msra.mxu0 %v564
    %608 = vmatprep.subr.mxu0 0.0
    %609 = vmatpush1.msra.mxu0 %v563
    %610 = vmatprep.subr.mxu0 0.0
    %611 = vmatpush1.msra.mxu0 %v562
    %612 = vmatprep.subr.mxu0 0.0
    %613 = vmatpush1.msra.mxu0 %v561
    %614 = vmatprep.subr.mxu0 0.0
    %615 = vmatpush1.msra.mxu0 %v560
    %616 = vmatprep.subr.mxu0 0.0
    %617 = vmatpush1.msra.mxu0 %v559
    %618 = vmatprep.subr.mxu0 0.0
    %619 = vmatpush2.msra.mxu0 0.0
    %620 = vmatprep.subr.mxu0 0.0
    %621 = vmatpush2.msra.mxu0 0.0
    %622 = vmatprep.subr.mxu0 0.0
    %623 = vmatpush2.msra.mxu0 0.0
    %624 = vmatprep.subr.mxu0 0.0
    %625 = vmatpush2.msra.mxu0 0.0
    %626 = vmatprep.subr.mxu0 0.0
    %627 = vmatpush2.msra.mxu0 0.0
    %628 = vmatprep.subr.mxu0 0.0
    %629 = vmatpush2.msra.mxu0 0.0
    %630 = vmatprep.subr.mxu0 0.0
    %631 = vmatpush2.msra.mxu0 0.0
    %632 = vmatprep.subr.mxu0 0.0
    %633 = vmatpush2.msra.mxu0 0.0
    %634 = vmatprep.subr.mxu0 0.0
    %635 = vmatpush2.msra.mxu0 0.0
    %636 = vmatprep.subr.mxu0 0.0
    %637 = vmatpush2.msra.mxu0 0.0
    %638 = vmatprep.subr.mxu0 0.0
    %639 = vmatpush2.msra.mxu0 0.0
    %640 = vmatprep.subr.mxu0 0.0
    %641 = vmatpush2.msra.mxu0 0.0
    %642 = vmatprep.subr.mxu0 0.0
    %643 = vmatpush2.msra.mxu0 0.0
    %644 = vmatprep.subr.mxu0 0.0
    %645 = vmatpush2.msra.mxu0 0.0
    %646 = vmatprep.subr.mxu0 0.0
    %647 = vmatpush2.msra.mxu0 0.0
    %648 = vmatprep.subr.mxu0 0.0
    %649 = vmatpush2.msra.mxu0 0.0
    %650 = vmatprep.mubr.f32.mxu0 0.0
    %651 = vmatmul.mubr.f32.gmra.mxu0 %v577
    %v652 = vpop.f32.mrf.mxu0
    %v653 = vadd.f32 0.0, %v652
    %v654 = vpop.f32.mrf.mxu0
    %655 = vmatprep.mubr.f32.mxu0 0.0
    %656 = vmatmul.mubr.f32.gmra.mxu0 %v580
    %v657 = vpop.f32.mrf.mxu0
    %v658 = vadd.f32 0.0, %v657
    %v659 = vpop.f32.mrf.mxu0
    %660 = vdwg.mxu0
    %v661 = vld [vmem:[%s8] sm:$0xff]
    %v662 = vld [vmem:[%s8 + $0x8] sm:$0xff]
    %v663 = vld [vmem:[%s8 + $0x10] sm:$0xff]
    %v664 = vld [vmem:[%s8 + $0x18] sm:$0xff]
    %v665 = vld [vmem:[%s9] sm:$0xff]
    %v666 = vld [vmem:[%s9 + $0x8] sm:$0xff]
    %v667 = vld [vmem:[%s9 + $0x10] sm:$0xff]
    %v668 = vld [vmem:[%s9 + $0x18] sm:$0xff]
    %v670 = vsel %vm221, %v495, 0
    %v673 = vsel %vm221, %v500, 0
    %675 = vmatprep.subr.mxu0 0.0
    %676 = vmatpush1.msra.mxu0 0.0
    %677 = vmatprep.subr.mxu0 0.0
    %678 = vmatpush1.msra.mxu0 0.0
    %679 = vmatprep.subr.mxu0 0.0
    %680 = vmatpush1.msra.mxu0 0.0
    %681 = vmatprep.subr.mxu0 0.0
    %682 = vmatpush1.msra.mxu0 0.0
    %683 = vmatprep.subr.mxu0 0.0
    %684 = vmatpush1.msra.mxu0 0.0
    %685 = vmatprep.subr.mxu0 0.0
    %686 = vmatpush1.msra.mxu0 0.0
    %687 = vmatprep.subr.mxu0 0.0
    %688 = vmatpush1.msra.mxu0 0.0
    %689 = vmatprep.subr.mxu0 0.0
    %690 = vmatpush1.msra.mxu0 0.0
    %691 = vmatprep.subr.mxu0 0.0
    %692 = vmatpush1.msra.mxu0 0.0
    %693 = vmatprep.subr.mxu0 0.0
    %694 = vmatpush1.msra.mxu0 0.0
    %695 = vmatprep.subr.mxu0 0.0
    %696 = vmatpush1.msra.mxu0 0.0
    %697 = vmatprep.subr.mxu0 0.0
    %698 = vmatpush1.msra.mxu0 0.0
    %699 = vmatprep.subr.mxu0 0.0
    %700 = vmatpush1.msra.mxu0 %v668
    %701 = vmatprep.subr.mxu0 0.0
    %702 = vmatpush1.msra.mxu0 %v667
    %703 = vmatprep.subr.mxu0 0.0
    %704 = vmatpush1.msra.mxu0 %v666
    %705 = vmatprep.subr.mxu0 0.0
    %706 = vmatpush1.msra.mxu0 %v665
    %707 = vmatprep.subr.mxu0 0.0
    %708 = vmatpush2.msra.mxu0 0.0
    %709 = vmatprep.subr.mxu0 0.0
    %710 = vmatpush2.msra.mxu0 0.0
    %711 = vmatprep.subr.mxu0 0.0
    %712 = vmatpush2.msra.mxu0 0.0
    %713 = vmatprep.subr.mxu0 0.0
    %714 = vmatpush2.msra.mxu0 0.0
    %715 = vmatprep.subr.mxu0 0.0
    %716 = vmatpush2.msra.mxu0 0.0
    %717 = vmatprep.subr.mxu0 0.0
    %718 = vmatpush2.msra.mxu0 0.0
    %719 = vmatprep.subr.mxu0 0.0
    %720 = vmatpush2.msra.mxu0 0.0
    %721 = vmatprep.subr.mxu0 0.0
    %722 = vmatpush2.msra.mxu0 0.0
    %723 = vmatprep.subr.mxu0 0.0
    %724 = vmatpush2.msra.mxu0 0.0
    %725 = vmatprep.subr.mxu0 0.0
    %726 = vmatpush2.msra.mxu0 0.0
    %727 = vmatprep.subr.mxu0 0.0
    %728 = vmatpush2.msra.mxu0 0.0
    %729 = vmatprep.subr.mxu0 0.0
    %730 = vmatpush2.msra.mxu0 0.0
    %731 = vmatprep.subr.mxu0 0.0
    %732 = vmatpush2.msra.mxu0 0.0
    %733 = vmatprep.subr.mxu0 0.0
    %734 = vmatpush2.msra.mxu0 0.0
    %735 = vmatprep.subr.mxu0 0.0
    %736 = vmatpush2.msra.mxu0 0.0
    %737 = vmatprep.subr.mxu0 0.0
    %738 = vmatpush2.msra.mxu0 0.0
    %739 = vmatprep.mubr.f32.mxu0 0.0
    %740 = vmatmul.mubr.f32.gmra.mxu0 %v670
    %v741 = vpop.f32.mrf.mxu0
    %v742 = vadd.f32 0.0, %v741
    %v743 = vpop.f32.mrf.mxu0
    %744 = vmatprep.mubr.f32.mxu0 0.0
    %745 = vmatmul.mubr.f32.gmra.mxu0 %v673
    %v746 = vpop.f32.mrf.mxu0
    %v747 = vadd.f32 0.0, %v746
    %v748 = vpop.f32.mrf.mxu0
    %749 = vdwg.mxu0
    %v751 = vsel %vm221, %v406, 0
    %v754 = vsel %vm221, %v411, 0
    %756 = vmatprep.subr.mxu0 0.0
    %757 = vmatpush1.msra.mxu0 0.0
    %758 = vmatprep.subr.mxu0 0.0
    %759 = vmatpush1.msra.mxu0 0.0
    %760 = vmatprep.subr.mxu0 0.0
    %761 = vmatpush1.msra.mxu0 0.0
    %762 = vmatprep.subr.mxu0 0.0
    %763 = vmatpush1.msra.mxu0 0.0
    %764 = vmatprep.subr.mxu0 0.0
    %765 = vmatpush1.msra.mxu0 0.0
    %766 = vmatprep.subr.mxu0 0.0
    %767 = vmatpush1.msra.mxu0 0.0
    %768 = vmatprep.subr.mxu0 0.0
    %769 = vmatpush1.msra.mxu0 0.0
    %770 = vmatprep.subr.mxu0 0.0
    %771 = vmatpush1.msra.mxu0 0.0
    %772 = vmatprep.subr.mxu0 0.0
    %773 = vmatpush1.msra.mxu0 0.0
    %774 = vmatprep.subr.mxu0 0.0
    %775 = vmatpush1.msra.mxu0 0.0
    %776 = vmatprep.subr.mxu0 0.0
    %777 = vmatpush1.msra.mxu0 0.0
    %778 = vmatprep.subr.mxu0 0.0
    %779 = vmatpush1.msra.mxu0 0.0
    %780 = vmatprep.subr.mxu0 0.0
    %781 = vmatpush1.msra.mxu0 %v664
    %782 = vmatprep.subr.mxu0 0.0
    %783 = vmatpush1.msra.mxu0 %v663
    %784 = vmatprep.subr.mxu0 0.0
    %785 = vmatpush1.msra.mxu0 %v662
    %786 = vmatprep.subr.mxu0 0.0
    %787 = vmatpush1.msra.mxu0 %v661
    %788 = vmatprep.subr.mxu0 0.0
    %789 = vmatpush2.msra.mxu0 0.0
    %790 = vmatprep.subr.mxu0 0.0
    %791 = vmatpush2.msra.mxu0 0.0
    %792 = vmatprep.subr.mxu0 0.0
    %793 = vmatpush2.msra.mxu0 0.0
    %794 = vmatprep.subr.mxu0 0.0
    %795 = vmatpush2.msra.mxu0 0.0
    %796 = vmatprep.subr.mxu0 0.0
    %797 = vmatpush2.msra.mxu0 0.0
    %798 = vmatprep.subr.mxu0 0.0
    %799 = vmatpush2.msra.mxu0 0.0
    %800 = vmatprep.subr.mxu0 0.0
    %801 = vmatpush2.msra.mxu0 0.0
    %802 = vmatprep.subr.mxu0 0.0
    %803 = vmatpush2.msra.mxu0 0.0
    %804 = vmatprep.subr.mxu0 0.0
    %805 = vmatpush2.msra.mxu0 0.0
    %806 = vmatprep.subr.mxu0 0.0
    %807 = vmatpush2.msra.mxu0 0.0
    %808 = vmatprep.subr.mxu0 0.0
    %809 = vmatpush2.msra.mxu0 0.0
    %810 = vmatprep.subr.mxu0 0.0
    %811 = vmatpush2.msra.mxu0 0.0
    %812 = vmatprep.subr.mxu0 0.0
    %813 = vmatpush2.msra.mxu0 0.0
    %814 = vmatprep.subr.mxu0 0.0
    %815 = vmatpush2.msra.mxu0 0.0
    %816 = vmatprep.subr.mxu0 0.0
    %817 = vmatpush2.msra.mxu0 0.0
    %818 = vmatprep.subr.mxu0 0.0
    %819 = vmatpush2.msra.mxu0 0.0
    %820 = vmatprep.mubr.f32.mxu0 0.0
    %821 = vmatmul.mubr.f32.gmra.mxu0 %v751
    %v822 = vpop.f32.mrf.mxu0
    %v823 = vadd.f32 %v742, %v822
    %v824 = vpop.f32.mrf.mxu0
    %825 = vmatprep.mubr.f32.mxu0 0.0
    %826 = vmatmul.mubr.f32.gmra.mxu0 %v754
    %v827 = vpop.f32.mrf.mxu0
    %v828 = vadd.f32 %v747, %v827
    %v829 = vpop.f32.mrf.mxu0
    %830 = vdwg.mxu0
    %v831 = vld [vmem:[%s10] sm:$0x1]
    %v833 = vlaneseq
    %v834 = vshrl.u32 %v833, 7
    %v835 = vsub.s32 0, %v834
    %v836 = vrot.slane %v831, %v835
    %v838 = vadd.f32 %v823, %v836
    %v839 = vadd.f32 %v828, %v836
    %v840 = vld [vmem:[%s11] sm:$0x1]
    %v842 = vlaneseq
    %v843 = vshrl.u32 %v842, 7
    %v844 = vsub.s32 0, %v843
    %v845 = vrot.slane %v840, %v844
    %846 = vrot.lane.b32.xlu0 %v845, 64
    %v847 = vpop.permute.xlu0 %846
    %v849 = vadd.f32 %v823, %v847
    %v850 = vadd.f32 %v828, %v847
    %v851 = vld [vmem:[%s1] sm:$0xff]
    %v852 = vld [vmem:[%s1 + $0x8] sm:$0x3f]
    %v853 = vld [vmem:[%s12] sm:$0xff]
    %v854 = vld [vmem:[%s12 + $0x8] sm:$0xff]
    %v855 = vld [vmem:[%s12 + $0x10] sm:$0xff]
    %v856 = vld [vmem:[%s12 + $0x18] sm:$0xff]
    %v857 = vld [vmem:[%s12 + $0x20] sm:$0xff]
    %v858 = vld [vmem:[%s12 + $0x28] sm:$0xff]
    %v859 = vld [vmem:[%s13] sm:$0x1]
    %v861 = vlaneseq
    %v862 = vshrl.u32 %v861, 7
    %v863 = vsub.s32 0, %v862
    %v864 = vrot.slane %v859, %v863
    %vm866 = vcmask 392192
    %v868 = vsel %vm866, %v851, 0
    %v871 = vsel %vm866, %v852, 0
    %873 = vmatprep.subr.mxu0 0.0
    %874 = vmatpush1.msra.mxu0 0.0
    %875 = vmatprep.subr.mxu0 0.0
    %876 = vmatpush1.msra.mxu0 0.0
    %877 = vmatprep.subr.mxu0 0.0
    %878 = vmatpush1.msra.mxu0 0.0
    %879 = vmatprep.subr.mxu0 0.0
    %880 = vmatpush1.msra.mxu0 0.0
    %881 = vmatprep.subr.mxu0 0.0
    %882 = vmatpush1.msra.mxu0 0.0
    %883 = vmatprep.subr.mxu0 0.0
    %884 = vmatpush1.msra.mxu0 0.0
    %885 = vmatprep.subr.mxu0 0.0
    %886 = vmatpush1.msra.mxu0 0.0
    %887 = vmatprep.subr.mxu0 0.0
    %888 = vmatpush1.msra.mxu0 0.0
    %889 = vmatprep.subr.mxu0 0.0
    %890 = vmatpush1.msra.mxu0 0.0
    %891 = vmatprep.subr.mxu0 0.0
    %892 = vmatpush1.msra.mxu0 0.0
    %893 = vmatprep.subr.mxu0 0.0
    %894 = vmatpush1.msra.mxu0 %v858
    %895 = vmatprep.subr.mxu0 0.0
    %896 = vmatpush1.msra.mxu0 %v857
    %897 = vmatprep.subr.mxu0 0.0
    %898 = vmatpush1.msra.mxu0 %v856
    %899 = vmatprep.subr.mxu0 0.0
    %900 = vmatpush1.msra.mxu0 %v855
    %901 = vmatprep.subr.mxu0 0.0
    %902 = vmatpush1.msra.mxu0 %v854
    %903 = vmatprep.subr.mxu0 0.0
    %904 = vmatpush1.msra.mxu0 %v853
    %905 = vmatprep.subr.mxu0 0.0
    %906 = vmatpush2.msra.mxu0 0.0
    %907 = vmatprep.subr.mxu0 0.0
    %908 = vmatpush2.msra.mxu0 0.0
    %909 = vmatprep.subr.mxu0 0.0
    %910 = vmatpush2.msra.mxu0 0.0
    %911 = vmatprep.subr.mxu0 0.0
    %912 = vmatpush2.msra.mxu0 0.0
    %913 = vmatprep.subr.mxu0 0.0
    %914 = vmatpush2.msra.mxu0 0.0
    %915 = vmatprep.subr.mxu0 0.0
    %916 = vmatpush2.msra.mxu0 0.0
    %917 = vmatprep.subr.mxu0 0.0
    %918 = vmatpush2.msra.mxu0 0.0
    %919 = vmatprep.subr.mxu0 0.0
    %920 = vmatpush2.msra.mxu0 0.0
    %921 = vmatprep.subr.mxu0 0.0
    %922 = vmatpush2.msra.mxu0 0.0
    %923 = vmatprep.subr.mxu0 0.0
    %924 = vmatpush2.msra.mxu0 0.0
    %925 = vmatprep.subr.mxu0 0.0
    %926 = vmatpush2.msra.mxu0 0.0
    %927 = vmatprep.subr.mxu0 0.0
    %928 = vmatpush2.msra.mxu0 0.0
    %929 = vmatprep.subr.mxu0 0.0
    %930 = vmatpush2.msra.mxu0 0.0
    %931 = vmatprep.subr.mxu0 0.0
    %932 = vmatpush2.msra.mxu0 0.0
    %933 = vmatprep.subr.mxu0 0.0
    %934 = vmatpush2.msra.mxu0 0.0
    %935 = vmatprep.subr.mxu0 0.0
    %936 = vmatpush2.msra.mxu0 0.0
    %937 = vmatprep.mubr.f32.mxu0 0.0
    %938 = vmatmul.mubr.f32.gmra.mxu0 %v868
    %v939 = vpop.f32.mrf.mxu0
    %v940 = vadd.f32 %v864, %v939
    %v941 = vpop.f32.mrf.mxu0
    %942 = vmatprep.mubr.f32.mxu0 0.0
    %943 = vmatmul.mubr.f32.gmra.mxu0 %v871
    %v944 = vpop.f32.mrf.mxu0
    %v945 = vadd.f32 %v864, %v944
    %v946 = vpop.f32.mrf.mxu0
    %947 = vdwg.mxu0
    %v948 = vmul.f32 %v838, %v940
    %v949 = vmul.f32 %v839, %v945
    %v950 = vld [vmem:[%s14] sm:$0xff]
    %v951 = vld [vmem:[%s14 + $0x8] sm:$0xff]
    %v952 = vld [vmem:[%s14 + $0x10] sm:$0xff]
    %v953 = vld [vmem:[%s14 + $0x18] sm:$0xff]
    %v954 = vld [vmem:[%s14 + $0x20] sm:$0xff]
    %v955 = vld [vmem:[%s14 + $0x28] sm:$0xff]
    %v956 = vld [vmem:[%s14 + $0x30] sm:$0xff]
    %v957 = vld [vmem:[%s14 + $0x38] sm:$0xff]
    %v958 = vld [vmem:[%s15] sm:$0x1]
    %v960 = vlaneseq
    %v961 = vshrl.u32 %v960, 7
    %v962 = vsub.s32 0, %v961
    %v963 = vrot.slane %v958, %v962
    %vm965 = vcmask 523264
    %v967 = vsel %vm965, %v948, 0
    %v970 = vsel %vm965, %v949, 0
    %972 = vmatprep.subr.mxu0 0.0
    %973 = vmatpush1.msra.mxu0 0.0
    %974 = vmatprep.subr.mxu0 0.0
    %975 = vmatpush1.msra.mxu0 0.0
    %976 = vmatprep.subr.mxu0 0.0
    %977 = vmatpush1.msra.mxu0 0.0
    %978 = vmatprep.subr.mxu0 0.0
    %979 = vmatpush1.msra.mxu0 0.0
    %980 = vmatprep.subr.mxu0 0.0
    %981 = vmatpush1.msra.mxu0 0.0
    %982 = vmatprep.subr.mxu0 0.0
    %983 = vmatpush1.msra.mxu0 0.0
    %984 = vmatprep.subr.mxu0 0.0
    %985 = vmatpush1.msra.mxu0 0.0
    %986 = vmatprep.subr.mxu0 0.0
    %987 = vmatpush1.msra.mxu0 0.0
    %988 = vmatprep.subr.mxu0 0.0
    %989 = vmatpush1.msra.mxu0 %v957
    %990 = vmatprep.subr.mxu0 0.0
    %991 = vmatpush1.msra.mxu0 %v956
    %992 = vmatprep.subr.mxu0 0.0
    %993 = vmatpush1.msra.mxu0 %v955
    %994 = vmatprep.subr.mxu0 0.0
    %995 = vmatpush1.msra.mxu0 %v954
    %996 = vmatprep.subr.mxu0 0.0
    %997 = vmatpush1.msra.mxu0 %v953
    %998 = vmatprep.subr.mxu0 0.0
    %999 = vmatpush1.msra.mxu0 %v952
    %1000 = vmatprep.subr.mxu0 0.0
    %1001 = vmatpush1.msra.mxu0 %v951
    %1002 = vmatprep.subr.mxu0 0.0
    %1003 = vmatpush1.msra.mxu0 %v950
    %1004 = vmatprep.subr.mxu0 0.0
    %1005 = vmatpush2.msra.mxu0 0.0
    %1006 = vmatprep.subr.mxu0 0.0
    %1007 = vmatpush2.msra.mxu0 0.0
    %1008 = vmatprep.subr.mxu0 0.0
    %1009 = vmatpush2.msra.mxu0 0.0
    %1010 = vmatprep.subr.mxu0 0.0
    %1011 = vmatpush2.msra.mxu0 0.0
    %1012 = vmatprep.subr.mxu0 0.0
    %1013 = vmatpush2.msra.mxu0 0.0
    %1014 = vmatprep.subr.mxu0 0.0
    %1015 = vmatpush2.msra.mxu0 0.0
    %1016 = vmatprep.subr.mxu0 0.0
    %1017 = vmatpush2.msra.mxu0 0.0
    %1018 = vmatprep.subr.mxu0 0.0
    %1019 = vmatpush2.msra.mxu0 0.0
    %1020 = vmatprep.subr.mxu0 0.0
    %1021 = vmatpush2.msra.mxu0 0.0
    %1022 = vmatprep.subr.mxu0 0.0
    %1023 = vmatpush2.msra.mxu0 0.0
    %1024 = vmatprep.subr.mxu0 0.0
    %1025 = vmatpush2.msra.mxu0 0.0
    %1026 = vmatprep.subr.mxu0 0.0
    %1027 = vmatpush2.msra.mxu0 0.0
    %1028 = vmatprep.subr.mxu0 0.0
    %1029 = vmatpush2.msra.mxu0 0.0
    %1030 = vmatprep.subr.mxu0 0.0
    %1031 = vmatpush2.msra.mxu0 0.0
    %1032 = vmatprep.subr.mxu0 0.0
    %1033 = vmatpush2.msra.mxu0 0.0
    %1034 = vmatprep.subr.mxu0 0.0
    %1035 = vmatpush2.msra.mxu0 0.0
    %1036 = vmatprep.mubr.f32.mxu0 0.0
    %1037 = vmatmul.mubr.f32.gmra.mxu0 %v967
    %v1038 = vpop.f32.mrf.mxu0
    %v1039 = vadd.f32 %v963, %v1038
    %v1040 = vpop.f32.mrf.mxu0
    %1041 = vmatprep.mubr.f32.mxu0 0.0
    %1042 = vmatmul.mubr.f32.gmra.mxu0 %v970
    %v1043 = vpop.f32.mrf.mxu0
    %v1044 = vadd.f32 %v963, %v1043
    %v1045 = vpop.f32.mrf.mxu0
    %1046 = vdwg.mxu0
    %1049 = vrot.lane.b32.xlu0 %v849, 64
    %v1050 = vpop.permute.xlu0 %1049
    %1051 = vrot.lane.b32.xlu0 %v850, 64
    %v1052 = vpop.permute.xlu0 %1051
    %v1055 = vadd.f32 %v1039, %v1050
    %v1056 = vadd.f32 %v1044, %v1052
    %v1057 = vadd.f32 %v1055, %v653
    %v1058 = vadd.f32 %v1056, %v658
    %vm1059 = vcmask 130048
    %1060 = vst.msk [vmem:[#allocation4] sm:$0xff] %vm1059, %v1057
    %vm1061 = vcmask 128000
    %1062 = vst.msk [vmem:[#allocation4 + $0x8] sm:$0x3f] %vm1061, %v1058
    // Predicated region
    $region70: #{tpu_custom_call.1} parent=1 // pred_check
      _
    $region71: #{tpu_custom_call.1} parent=1 // pred_check_branch
      %1064 = sbr.rel (0) target = $region73
    $region72: #{tpu_custom_call.1} parent=1 // pred_region
      %s1066 = ssub.s32 256, 256
      %1067 = vsyncadd [#allocation3], %s1066
      %s1068 = sshll.u32 [#allocation2], 4
      %s1069 = int_to_ptr.vmem [resolvable:$true] %s1068
      %1074 = dma.vmem_to_hbm [thread:$0]  %s1069, 256, %s17, [#allocation3], 128, 128, 8
    $region73: #{tpu_custom_call.1} parent=1 // pred_fallthru
      _
    // Predicated region
    $region74: #{tpu_custom_call.1} parent=1 // pred_check
      _
    $region75: #{tpu_custom_call.1} parent=1 // pred_check_branch
      %1076 = sbr.rel (0) target = $region77
    $region76: #{tpu_custom_call.1} parent=1 // pred_region
      %s1078 = ssub.s32 256, 256
      %1079 = vsyncadd [#allocation5], %s1078
      %s1080 = sshll.u32 [#allocation4], 4
      %s1081 = int_to_ptr.vmem [resolvable:$true] %s1080
      %1086 = dma.vmem_to_hbm [thread:$0]  %s1081, 256, %s18, [#allocation5], 128, 128, 8
    $region77: #{tpu_custom_call.1} parent=1 // pred_fallthru
      _
    // Predicated region
    $region78: #{tpu_custom_call.1} parent=1 // pred_check
      _
    $region79: #{tpu_custom_call.1} parent=1 // pred_check_branch
      %1088 = sbr.rel (0) target = $region81
    $region80: #{tpu_custom_call.1} parent=1 // pred_region
      %1089 = dma.done [#allocation3], 256
    $region81: #{tpu_custom_call.1} parent=1 // pred_fallthru
      _
    // Predicated region
    $region82: #{tpu_custom_call.1} parent=1 // pred_check
      _
    $region83: #{tpu_custom_call.1} parent=1 // pred_check_branch
      %1091 = sbr.rel (0) target = $region85
    $region84: #{tpu_custom_call.1} parent=1 // pred_region
      %1092 = dma.done [#allocation5], 256
    $region85: #{tpu_custom_call.1} parent=1 // pred_fallthru
      _
    %1093 = vsyncpa [#allocation3], 1
    %1094 = vsyncpa [#allocation5], 1

</llo_original>
